<compile_context>
chip_gen: v7x
topology: tpu7x:2x2x1
jax: 0.10.0
libtpu: 0.0.40
codegen_flags: <defaults>
</compile_context>

<pallas_src>
import functools

import jax
import jax.numpy as jnp
from jax.experimental import pallas as pl
from jax.experimental.pallas import tpu as pltpu


def lstm_crf_kernel(tok_ref,       # (S,)    int32 token ids (SMEM)
                    emb_hbm,       # (V, E)  f32 embedding table (HBM, pl.ANY)
                    wih_ref,       # (E, 4H) f32 fused input->gates weights (VMEM)
                    whh_ref,       # (H, 4H) f32 fused hidden->gates weights (VMEM)
                    b_ref,         # (1, 4H) f32 fused bias (b_ih + b_hh) (VMEM)
                    wout_ref,      # (H, Tp) f32 hidden2tag weight, lane-padded
                    bout_ref,      # (1, Tp) f32 hidden2tag bias, pad cols = -1e30
                    out_ref,       # (S, Tp) f32 log-probabilities (padded)
                    xs_ref,        # (S, E)  f32 scratch: gathered embeddings
                    hs_ref,        # (S, H)  f32 scratch: per-step hidden states
                    sem,           # (S,)    DMA semaphores
                    *, seq_len, hidden_dim):
    H = hidden_dim

    # ---- Row-gather DMA: fetch only the S needed embedding rows from HBM ----
    # (table never becomes VMEM-resident; no one-hot matmul).
    copies = [
        pltpu.make_async_copy(
            emb_hbm.at[pl.ds(tok_ref[t], 1), :],   # dynamic row in HBM
            xs_ref.at[pl.ds(t, 1), :],             # row t of the VMEM buffer
            sem.at[t])
        for t in range(seq_len)
    ]
    for cp in copies:
        cp.start()
    for cp in copies:
        cp.wait()

    # ---- Hoisted input projection: one (S,E)@(E,4H) MXU matmul + bias ----
    pre = (jnp.dot(xs_ref[...], wih_ref[...],
                   preferred_element_type=jnp.float32)
           + b_ref[...])                                           # (S, 4H)

    W_hh = whh_ref[...]                                            # (H, 4H)

    h = jnp.zeros((1, H), jnp.float32)
    c = jnp.zeros((1, H), jnp.float32)

    # Fully-unrolled static recurrence (S is a compile-time constant, S=8).
    # Only h @ W_hh remains on the serial per-step critical path.
    for t in range(seq_len):
        gates = pre[t:t + 1, :] + jnp.dot(h, W_hh,
                                          preferred_element_type=jnp.float32)
        # One full-width sigmoid and one full-width tanh over the (1,128)
        # gate vector (EUP), then static lane slices for i/f/g/o quarters.
        sig = jax.nn.sigmoid(gates)
        tnh = jnp.tanh(gates)
        i_g = sig[:, 0 * H:1 * H]
        f_g = sig[:, 1 * H:2 * H]
        g_g = tnh[:, 2 * H:3 * H]
        o_g = sig[:, 3 * H:4 * H]

        c = f_g * c + i_g * g_g
        h = o_g * jnp.tanh(c)
        hs_ref[t:t + 1, :] = h        # cheap vst; bounds vreg live ranges

    # ---- hidden2tag + log_softmax (lane-dense, padded cols biased to -1e30) ----
    tag = (jnp.dot(hs_ref[...], wout_ref[...],
                   preferred_element_type=jnp.float32)
           + bout_ref[...])                                        # (S, Tp)
    m = jnp.max(tag, axis=-1, keepdims=True)
    lse = m + jnp.log(jnp.sum(jnp.exp(tag - m), axis=-1, keepdims=True))
    out_ref[...] = tag - lse


def lstm_crf_forward(sentence, emb, wih, whh, b, wout, bout):
    """sentence:(S,) int; emb:(V,E); wih:(4,E,H); whh:(4,H,H); b:(4,1,H);
    wout:(H,T); bout:(1,T). Gate order [i, f, g, o] (PyTorch nn.LSTM)."""
    seq_len = sentence.shape[0]
    vocab, E = emb.shape
    H = whh.shape[-1]
    T = wout.shape[-1]
    TP = max(128, pl.cdiv(T, 128) * 128)   # lane-dense tag dimension

    # Host-side layout plumbing: fuse per-gate weights into lane-dense (·, 4H),
    # and pad the tag head to TP lanes (padded bias -> -1e30 so softmax is exact).
    wih_f = jnp.transpose(wih, (1, 0, 2)).reshape(E, 4 * H)
    whh_f = jnp.transpose(whh, (1, 0, 2)).reshape(H, 4 * H)
    b_f = jnp.transpose(b, (1, 0, 2)).reshape(1, 4 * H)
    wout_p = jnp.zeros((H, TP), jnp.float32).at[:, :T].set(wout)
    bout_p = jnp.full((1, TP), -1e30, jnp.float32).at[:, :T].set(bout)
    tok = sentence.astype(jnp.int32)

    kernel = functools.partial(lstm_crf_kernel, seq_len=seq_len, hidden_dim=H)

    out_p = pl.pallas_call(
        kernel,
        out_shape=jax.ShapeDtypeStruct((seq_len, TP), jnp.float32),
        in_specs=[
            pl.BlockSpec(memory_space=pltpu.MemorySpace.SMEM),   # token ids
            pl.BlockSpec(memory_space=pl.ANY),                   # emb table stays in HBM
            pl.BlockSpec(memory_space=pltpu.MemorySpace.VMEM),   # fused W_ih
            pl.BlockSpec(memory_space=pltpu.MemorySpace.VMEM),   # fused W_hh
            pl.BlockSpec(memory_space=pltpu.MemorySpace.VMEM),   # fused bias
            pl.BlockSpec(memory_space=pltpu.MemorySpace.VMEM),   # hidden2tag W (padded)
            pl.BlockSpec(memory_space=pltpu.MemorySpace.VMEM),   # hidden2tag b (padded)
        ],
        out_specs=pl.BlockSpec(memory_space=pltpu.MemorySpace.VMEM),
        scratch_shapes=[
            pltpu.VMEM((seq_len, E), jnp.float32),   # gathered embedding rows
            pltpu.VMEM((seq_len, H), jnp.float32),   # per-step hidden states
            pltpu.SemaphoreType.DMA((seq_len,)),     # row-gather DMA semaphores
        ],
    )(tok, emb, wih_f, whh_f, b_f, wout_p, bout_p)

    return out_p[:, :T]


def reference_forward(sentence, emb, wih, whh, b, wout, bout):
    """Pure-JAX reference (mirrors torch nn.Embedding + nn.LSTM + Linear + log_softmax)."""
    H = whh.shape[-1]
    x = emb[sentence]  # (S, E)

    def step(carry, xt):
        h, c = carry
        gates = [xt @ wih[k] + h @ whh[k] + b[k, 0] for k in range(4)]
        i = jax.nn.sigmoid(gates[0])
        f = jax.nn.sigmoid(gates[1])
        g = jnp.tanh(gates[2])
        o = jax.nn.sigmoid(gates[3])
        c = f * c + i * g
        h = o * jnp.tanh(c)
        return (h, c), h

    (_, _), hs = jax.lax.scan(step, (jnp.zeros(H), jnp.zeros(H)), x)
    tag = hs @ wout + bout[0]
    return jax.nn.log_softmax(tag, axis=1)


if __name__ == "__main__":
    # Small shapes consistent with the module's forward (batch of 1 sentence).
    vocab_size = 50
    embedding_dim = 32
    hidden_dim = 32
    tagset_size = 10
    seq_len = 8

    key = jax.random.PRNGKey(0)
    k_emb, k_wih, k_whh, k_b, k_wo, k_bo, k_sent = jax.random.split(key, 7)

    scale = 1.0 / jnp.sqrt(hidden_dim)
    emb = jax.random.normal(k_emb, (vocab_size, embedding_dim), jnp.float32)
    wih = jax.random.uniform(k_wih, (4, embedding_dim, hidden_dim), jnp.float32,
                             -scale, scale)
    whh = jax.random.uniform(k_whh, (4, hidden_dim, hidden_dim), jnp.float32,
                             -scale, scale)
    # b = b_ih + b_hh pre-summed
    b = jax.random.uniform(k_b, (4, 1, hidden_dim), jnp.float32, -scale, scale)
    wout = jax.random.uniform(k_wo, (hidden_dim, tagset_size), jnp.float32,
                              -scale, scale)
    bout = jax.random.uniform(k_bo, (1, tagset_size), jnp.float32, -scale, scale)

    sentence = jax.random.randint(k_sent, (seq_len,), 0, vocab_size, jnp.int32)

    out = lstm_crf_forward(sentence, emb, wih, whh, b, wout, bout)
    out = jax.block_until_ready(out)

    ref = reference_forward(sentence, emb, wih, whh, b, wout, bout)
    assert out.shape == (seq_len, tagset_size)
    err = jnp.max(jnp.abs(out - ref))
    assert jnp.allclose(out, ref, atol=5e-5, rtol=5e-5), f"max abs err {err}"

    print("KERNEL_OK")
</pallas_src>

<mosaic_0001>
module attributes {stable_mosaic.version = 11 : i64} {
  func.func @lstm_crf_kernel(%arg0: memref<8xi32, #tpu.memory_space<smem>>, %arg1: memref<50x32xf32, #tpu.memory_space<any>>, %arg2: memref<32x128xf32, #tpu.memory_space<vmem>>, %arg3: memref<32x128xf32, #tpu.memory_space<vmem>>, %arg4: memref<1x128xf32, #tpu.memory_space<vmem>>, %arg5: memref<32x128xf32, #tpu.memory_space<vmem>>, %arg6: memref<1x128xf32, #tpu.memory_space<vmem>>, %arg7: memref<8x128xf32, #tpu.memory_space<vmem>>, %arg8: memref<8x32xf32, #tpu.memory_space<vmem>>, %arg9: memref<8x32xf32, #tpu.memory_space<vmem>>, %arg10: memref<8x!tpu.dma_semaphore, #tpu.memory_space<semaphore_mem>>) attributes {dimension_semantics = [], scalar_prefetch = 0 : i64, scratch_operands = 3 : i64, tpu.core_type = #tpu.core_type<tc>} {
    %c0 = arith.constant 0 : index
    %0 = memref.load %arg0[%c0] : memref<8xi32, #tpu.memory_space<smem>>
    %c1 = arith.constant 1 : index
    %1 = memref.load %arg0[%c1] : memref<8xi32, #tpu.memory_space<smem>>
    %c2 = arith.constant 2 : index
    %2 = memref.load %arg0[%c2] : memref<8xi32, #tpu.memory_space<smem>>
    %c3 = arith.constant 3 : index
    %3 = memref.load %arg0[%c3] : memref<8xi32, #tpu.memory_space<smem>>
    %c4 = arith.constant 4 : index
    %4 = memref.load %arg0[%c4] : memref<8xi32, #tpu.memory_space<smem>>
    %c5 = arith.constant 5 : index
    %5 = memref.load %arg0[%c5] : memref<8xi32, #tpu.memory_space<smem>>
    %c6 = arith.constant 6 : index
    %6 = memref.load %arg0[%c6] : memref<8xi32, #tpu.memory_space<smem>>
    %c7 = arith.constant 7 : index
    %7 = memref.load %arg0[%c7] : memref<8xi32, #tpu.memory_space<smem>>
    %c0_i32 = arith.constant 0 : i32
    %c0_i32_0 = arith.constant 0 : i32
    %8 = tpu.memref_slice %arg1[%0, %c0_i32_0] : memref<50x32xf32, #tpu.memory_space<any>> -> memref<1x32xf32, #tpu.memory_space<any>>
    %c0_i32_1 = arith.constant 0 : i32
    %c0_i32_2 = arith.constant 0 : i32
    %9 = tpu.memref_slice %arg8[%c0_i32_1, %c0_i32_2] : memref<8x32xf32, #tpu.memory_space<vmem>> -> memref<1x32xf32, #tpu.memory_space<vmem>>
    %10 = tpu.memref_slice %arg10[%c0_i32] : memref<8x!tpu.dma_semaphore, #tpu.memory_space<semaphore_mem>> -> memref<1x!tpu.dma_semaphore, #tpu.memory_space<semaphore_mem>>
    %11 = tpu.memref_squeeze %10 : memref<1x!tpu.dma_semaphore, #tpu.memory_space<semaphore_mem>> -> memref<!tpu.dma_semaphore, #tpu.memory_space<semaphore_mem>>
    tpu.enqueue_dma source(%8 : memref<1x32xf32, #tpu.memory_space<any>>) target(%9 : memref<1x32xf32, #tpu.memory_space<vmem>>) target_semaphore(%11 : memref<!tpu.dma_semaphore, #tpu.memory_space<semaphore_mem>>)
    %c1_i32 = arith.constant 1 : i32
    %c0_i32_3 = arith.constant 0 : i32
    %12 = tpu.memref_slice %arg1[%1, %c0_i32_3] : memref<50x32xf32, #tpu.memory_space<any>> -> memref<1x32xf32, #tpu.memory_space<any>>
    %c1_i32_4 = arith.constant 1 : i32
    %c0_i32_5 = arith.constant 0 : i32
    %13 = tpu.memref_slice %arg8[%c1_i32_4, %c0_i32_5] : memref<8x32xf32, #tpu.memory_space<vmem>> -> memref<1x32xf32, #tpu.memory_space<vmem>>
    %14 = tpu.memref_slice %arg10[%c1_i32] : memref<8x!tpu.dma_semaphore, #tpu.memory_space<semaphore_mem>> -> memref<1x!tpu.dma_semaphore, #tpu.memory_space<semaphore_mem>>
    %15 = tpu.memref_squeeze %14 : memref<1x!tpu.dma_semaphore, #tpu.memory_space<semaphore_mem>> -> memref<!tpu.dma_semaphore, #tpu.memory_space<semaphore_mem>>
    tpu.enqueue_dma source(%12 : memref<1x32xf32, #tpu.memory_space<any>>) target(%13 : memref<1x32xf32, #tpu.memory_space<vmem>>) target_semaphore(%15 : memref<!tpu.dma_semaphore, #tpu.memory_space<semaphore_mem>>)
    %c2_i32 = arith.constant 2 : i32
    %c0_i32_6 = arith.constant 0 : i32
    %16 = tpu.memref_slice %arg1[%2, %c0_i32_6] : memref<50x32xf32, #tpu.memory_space<any>> -> memref<1x32xf32, #tpu.memory_space<any>>
    %c2_i32_7 = arith.constant 2 : i32
    %c0_i32_8 = arith.constant 0 : i32
    %17 = tpu.memref_slice %arg8[%c2_i32_7, %c0_i32_8] : memref<8x32xf32, #tpu.memory_space<vmem>> -> memref<1x32xf32, #tpu.memory_space<vmem>>
    %18 = tpu.memref_slice %arg10[%c2_i32] : memref<8x!tpu.dma_semaphore, #tpu.memory_space<semaphore_mem>> -> memref<1x!tpu.dma_semaphore, #tpu.memory_space<semaphore_mem>>
    %19 = tpu.memref_squeeze %18 : memref<1x!tpu.dma_semaphore, #tpu.memory_space<semaphore_mem>> -> memref<!tpu.dma_semaphore, #tpu.memory_space<semaphore_mem>>
    tpu.enqueue_dma source(%16 : memref<1x32xf32, #tpu.memory_space<any>>) target(%17 : memref<1x32xf32, #tpu.memory_space<vmem>>) target_semaphore(%19 : memref<!tpu.dma_semaphore, #tpu.memory_space<semaphore_mem>>)
    %c3_i32 = arith.constant 3 : i32
    %c0_i32_9 = arith.constant 0 : i32
    %20 = tpu.memref_slice %arg1[%3, %c0_i32_9] : memref<50x32xf32, #tpu.memory_space<any>> -> memref<1x32xf32, #tpu.memory_space<any>>
    %c3_i32_10 = arith.constant 3 : i32
    %c0_i32_11 = arith.constant 0 : i32
    %21 = tpu.memref_slice %arg8[%c3_i32_10, %c0_i32_11] : memref<8x32xf32, #tpu.memory_space<vmem>> -> memref<1x32xf32, #tpu.memory_space<vmem>>
    %22 = tpu.memref_slice %arg10[%c3_i32] : memref<8x!tpu.dma_semaphore, #tpu.memory_space<semaphore_mem>> -> memref<1x!tpu.dma_semaphore, #tpu.memory_space<semaphore_mem>>
    %23 = tpu.memref_squeeze %22 : memref<1x!tpu.dma_semaphore, #tpu.memory_space<semaphore_mem>> -> memref<!tpu.dma_semaphore, #tpu.memory_space<semaphore_mem>>
    tpu.enqueue_dma source(%20 : memref<1x32xf32, #tpu.memory_space<any>>) target(%21 : memref<1x32xf32, #tpu.memory_space<vmem>>) target_semaphore(%23 : memref<!tpu.dma_semaphore, #tpu.memory_space<semaphore_mem>>)
    %c4_i32 = arith.constant 4 : i32
    %c0_i32_12 = arith.constant 0 : i32
    %24 = tpu.memref_slice %arg1[%4, %c0_i32_12] : memref<50x32xf32, #tpu.memory_space<any>> -> memref<1x32xf32, #tpu.memory_space<any>>
    %c4_i32_13 = arith.constant 4 : i32
    %c0_i32_14 = arith.constant 0 : i32
    %25 = tpu.memref_slice %arg8[%c4_i32_13, %c0_i32_14] : memref<8x32xf32, #tpu.memory_space<vmem>> -> memref<1x32xf32, #tpu.memory_space<vmem>>
    %26 = tpu.memref_slice %arg10[%c4_i32] : memref<8x!tpu.dma_semaphore, #tpu.memory_space<semaphore_mem>> -> memref<1x!tpu.dma_semaphore, #tpu.memory_space<semaphore_mem>>
    %27 = tpu.memref_squeeze %26 : memref<1x!tpu.dma_semaphore, #tpu.memory_space<semaphore_mem>> -> memref<!tpu.dma_semaphore, #tpu.memory_space<semaphore_mem>>
    tpu.enqueue_dma source(%24 : memref<1x32xf32, #tpu.memory_space<any>>) target(%25 : memref<1x32xf32, #tpu.memory_space<vmem>>) target_semaphore(%27 : memref<!tpu.dma_semaphore, #tpu.memory_space<semaphore_mem>>)
    %c5_i32 = arith.constant 5 : i32
    %c0_i32_15 = arith.constant 0 : i32
    %28 = tpu.memref_slice %arg1[%5, %c0_i32_15] : memref<50x32xf32, #tpu.memory_space<any>> -> memref<1x32xf32, #tpu.memory_space<any>>
    %c5_i32_16 = arith.constant 5 : i32
    %c0_i32_17 = arith.constant 0 : i32
    %29 = tpu.memref_slice %arg8[%c5_i32_16, %c0_i32_17] : memref<8x32xf32, #tpu.memory_space<vmem>> -> memref<1x32xf32, #tpu.memory_space<vmem>>
    %30 = tpu.memref_slice %arg10[%c5_i32] : memref<8x!tpu.dma_semaphore, #tpu.memory_space<semaphore_mem>> -> memref<1x!tpu.dma_semaphore, #tpu.memory_space<semaphore_mem>>
    %31 = tpu.memref_squeeze %30 : memref<1x!tpu.dma_semaphore, #tpu.memory_space<semaphore_mem>> -> memref<!tpu.dma_semaphore, #tpu.memory_space<semaphore_mem>>
    tpu.enqueue_dma source(%28 : memref<1x32xf32, #tpu.memory_space<any>>) target(%29 : memref<1x32xf32, #tpu.memory_space<vmem>>) target_semaphore(%31 : memref<!tpu.dma_semaphore, #tpu.memory_space<semaphore_mem>>)
    %c6_i32 = arith.constant 6 : i32
    %c0_i32_18 = arith.constant 0 : i32
    %32 = tpu.memref_slice %arg1[%6, %c0_i32_18] : memref<50x32xf32, #tpu.memory_space<any>> -> memref<1x32xf32, #tpu.memory_space<any>>
    %c6_i32_19 = arith.constant 6 : i32
    %c0_i32_20 = arith.constant 0 : i32
    %33 = tpu.memref_slice %arg8[%c6_i32_19, %c0_i32_20] : memref<8x32xf32, #tpu.memory_space<vmem>> -> memref<1x32xf32, #tpu.memory_space<vmem>>
    %34 = tpu.memref_slice %arg10[%c6_i32] : memref<8x!tpu.dma_semaphore, #tpu.memory_space<semaphore_mem>> -> memref<1x!tpu.dma_semaphore, #tpu.memory_space<semaphore_mem>>
    %35 = tpu.memref_squeeze %34 : memref<1x!tpu.dma_semaphore, #tpu.memory_space<semaphore_mem>> -> memref<!tpu.dma_semaphore, #tpu.memory_space<semaphore_mem>>
    tpu.enqueue_dma source(%32 : memref<1x32xf32, #tpu.memory_space<any>>) target(%33 : memref<1x32xf32, #tpu.memory_space<vmem>>) target_semaphore(%35 : memref<!tpu.dma_semaphore, #tpu.memory_space<semaphore_mem>>)
    %c7_i32 = arith.constant 7 : i32
    %c0_i32_21 = arith.constant 0 : i32
    %36 = tpu.memref_slice %arg1[%7, %c0_i32_21] : memref<50x32xf32, #tpu.memory_space<any>> -> memref<1x32xf32, #tpu.memory_space<any>>
    %c7_i32_22 = arith.constant 7 : i32
    %c0_i32_23 = arith.constant 0 : i32
    %37 = tpu.memref_slice %arg8[%c7_i32_22, %c0_i32_23] : memref<8x32xf32, #tpu.memory_space<vmem>> -> memref<1x32xf32, #tpu.memory_space<vmem>>
    %38 = tpu.memref_slice %arg10[%c7_i32] : memref<8x!tpu.dma_semaphore, #tpu.memory_space<semaphore_mem>> -> memref<1x!tpu.dma_semaphore, #tpu.memory_space<semaphore_mem>>
    %39 = tpu.memref_squeeze %38 : memref<1x!tpu.dma_semaphore, #tpu.memory_space<semaphore_mem>> -> memref<!tpu.dma_semaphore, #tpu.memory_space<semaphore_mem>>
    tpu.enqueue_dma source(%36 : memref<1x32xf32, #tpu.memory_space<any>>) target(%37 : memref<1x32xf32, #tpu.memory_space<vmem>>) target_semaphore(%39 : memref<!tpu.dma_semaphore, #tpu.memory_space<semaphore_mem>>)
    %c0_i32_24 = arith.constant 0 : i32
    %c0_i32_25 = arith.constant 0 : i32
    %40 = tpu.memref_slice %arg1[%0, %c0_i32_25] : memref<50x32xf32, #tpu.memory_space<any>> -> memref<1x32xf32, #tpu.memory_space<any>>
    %c0_i32_26 = arith.constant 0 : i32
    %c0_i32_27 = arith.constant 0 : i32
    %41 = tpu.memref_slice %arg8[%c0_i32_26, %c0_i32_27] : memref<8x32xf32, #tpu.memory_space<vmem>> -> memref<1x32xf32, #tpu.memory_space<vmem>>
    %42 = tpu.memref_slice %arg10[%c0_i32_24] : memref<8x!tpu.dma_semaphore, #tpu.memory_space<semaphore_mem>> -> memref<1x!tpu.dma_semaphore, #tpu.memory_space<semaphore_mem>>
    %43 = tpu.memref_squeeze %42 : memref<1x!tpu.dma_semaphore, #tpu.memory_space<semaphore_mem>> -> memref<!tpu.dma_semaphore, #tpu.memory_space<semaphore_mem>>
    tpu.wait_dma2 semaphore(%43 : memref<!tpu.dma_semaphore, #tpu.memory_space<semaphore_mem>>) src(%40 : memref<1x32xf32, #tpu.memory_space<any>>) dst(%41 : memref<1x32xf32, #tpu.memory_space<vmem>>)
    %c1_i32_28 = arith.constant 1 : i32
    %c0_i32_29 = arith.constant 0 : i32
    %44 = tpu.memref_slice %arg1[%1, %c0_i32_29] : memref<50x32xf32, #tpu.memory_space<any>> -> memref<1x32xf32, #tpu.memory_space<any>>
    %c1_i32_30 = arith.constant 1 : i32
    %c0_i32_31 = arith.constant 0 : i32
    %45 = tpu.memref_slice %arg8[%c1_i32_30, %c0_i32_31] : memref<8x32xf32, #tpu.memory_space<vmem>> -> memref<1x32xf32, #tpu.memory_space<vmem>>
    %46 = tpu.memref_slice %arg10[%c1_i32_28] : memref<8x!tpu.dma_semaphore, #tpu.memory_space<semaphore_mem>> -> memref<1x!tpu.dma_semaphore, #tpu.memory_space<semaphore_mem>>
    %47 = tpu.memref_squeeze %46 : memref<1x!tpu.dma_semaphore, #tpu.memory_space<semaphore_mem>> -> memref<!tpu.dma_semaphore, #tpu.memory_space<semaphore_mem>>
    tpu.wait_dma2 semaphore(%47 : memref<!tpu.dma_semaphore, #tpu.memory_space<semaphore_mem>>) src(%44 : memref<1x32xf32, #tpu.memory_space<any>>) dst(%45 : memref<1x32xf32, #tpu.memory_space<vmem>>)
    %c2_i32_32 = arith.constant 2 : i32
    %c0_i32_33 = arith.constant 0 : i32
    %48 = tpu.memref_slice %arg1[%2, %c0_i32_33] : memref<50x32xf32, #tpu.memory_space<any>> -> memref<1x32xf32, #tpu.memory_space<any>>
    %c2_i32_34 = arith.constant 2 : i32
    %c0_i32_35 = arith.constant 0 : i32
    %49 = tpu.memref_slice %arg8[%c2_i32_34, %c0_i32_35] : memref<8x32xf32, #tpu.memory_space<vmem>> -> memref<1x32xf32, #tpu.memory_space<vmem>>
    %50 = tpu.memref_slice %arg10[%c2_i32_32] : memref<8x!tpu.dma_semaphore, #tpu.memory_space<semaphore_mem>> -> memref<1x!tpu.dma_semaphore, #tpu.memory_space<semaphore_mem>>
    %51 = tpu.memref_squeeze %50 : memref<1x!tpu.dma_semaphore, #tpu.memory_space<semaphore_mem>> -> memref<!tpu.dma_semaphore, #tpu.memory_space<semaphore_mem>>
    tpu.wait_dma2 semaphore(%51 : memref<!tpu.dma_semaphore, #tpu.memory_space<semaphore_mem>>) src(%48 : memref<1x32xf32, #tpu.memory_space<any>>) dst(%49 : memref<1x32xf32, #tpu.memory_space<vmem>>)
    %c3_i32_36 = arith.constant 3 : i32
    %c0_i32_37 = arith.constant 0 : i32
    %52 = tpu.memref_slice %arg1[%3, %c0_i32_37] : memref<50x32xf32, #tpu.memory_space<any>> -> memref<1x32xf32, #tpu.memory_space<any>>
    %c3_i32_38 = arith.constant 3 : i32
    %c0_i32_39 = arith.constant 0 : i32
    %53 = tpu.memref_slice %arg8[%c3_i32_38, %c0_i32_39] : memref<8x32xf32, #tpu.memory_space<vmem>> -> memref<1x32xf32, #tpu.memory_space<vmem>>
    %54 = tpu.memref_slice %arg10[%c3_i32_36] : memref<8x!tpu.dma_semaphore, #tpu.memory_space<semaphore_mem>> -> memref<1x!tpu.dma_semaphore, #tpu.memory_space<semaphore_mem>>
    %55 = tpu.memref_squeeze %54 : memref<1x!tpu.dma_semaphore, #tpu.memory_space<semaphore_mem>> -> memref<!tpu.dma_semaphore, #tpu.memory_space<semaphore_mem>>
    tpu.wait_dma2 semaphore(%55 : memref<!tpu.dma_semaphore, #tpu.memory_space<semaphore_mem>>) src(%52 : memref<1x32xf32, #tpu.memory_space<any>>) dst(%53 : memref<1x32xf32, #tpu.memory_space<vmem>>)
    %c4_i32_40 = arith.constant 4 : i32
    %c0_i32_41 = arith.constant 0 : i32
    %56 = tpu.memref_slice %arg1[%4, %c0_i32_41] : memref<50x32xf32, #tpu.memory_space<any>> -> memref<1x32xf32, #tpu.memory_space<any>>
    %c4_i32_42 = arith.constant 4 : i32
    %c0_i32_43 = arith.constant 0 : i32
    %57 = tpu.memref_slice %arg8[%c4_i32_42, %c0_i32_43] : memref<8x32xf32, #tpu.memory_space<vmem>> -> memref<1x32xf32, #tpu.memory_space<vmem>>
    %58 = tpu.memref_slice %arg10[%c4_i32_40] : memref<8x!tpu.dma_semaphore, #tpu.memory_space<semaphore_mem>> -> memref<1x!tpu.dma_semaphore, #tpu.memory_space<semaphore_mem>>
    %59 = tpu.memref_squeeze %58 : memref<1x!tpu.dma_semaphore, #tpu.memory_space<semaphore_mem>> -> memref<!tpu.dma_semaphore, #tpu.memory_space<semaphore_mem>>
    tpu.wait_dma2 semaphore(%59 : memref<!tpu.dma_semaphore, #tpu.memory_space<semaphore_mem>>) src(%56 : memref<1x32xf32, #tpu.memory_space<any>>) dst(%57 : memref<1x32xf32, #tpu.memory_space<vmem>>)
    %c5_i32_44 = arith.constant 5 : i32
    %c0_i32_45 = arith.constant 0 : i32
    %60 = tpu.memref_slice %arg1[%5, %c0_i32_45] : memref<50x32xf32, #tpu.memory_space<any>> -> memref<1x32xf32, #tpu.memory_space<any>>
    %c5_i32_46 = arith.constant 5 : i32
    %c0_i32_47 = arith.constant 0 : i32
    %61 = tpu.memref_slice %arg8[%c5_i32_46, %c0_i32_47] : memref<8x32xf32, #tpu.memory_space<vmem>> -> memref<1x32xf32, #tpu.memory_space<vmem>>
    %62 = tpu.memref_slice %arg10[%c5_i32_44] : memref<8x!tpu.dma_semaphore, #tpu.memory_space<semaphore_mem>> -> memref<1x!tpu.dma_semaphore, #tpu.memory_space<semaphore_mem>>
    %63 = tpu.memref_squeeze %62 : memref<1x!tpu.dma_semaphore, #tpu.memory_space<semaphore_mem>> -> memref<!tpu.dma_semaphore, #tpu.memory_space<semaphore_mem>>
    tpu.wait_dma2 semaphore(%63 : memref<!tpu.dma_semaphore, #tpu.memory_space<semaphore_mem>>) src(%60 : memref<1x32xf32, #tpu.memory_space<any>>) dst(%61 : memref<1x32xf32, #tpu.memory_space<vmem>>)
    %c6_i32_48 = arith.constant 6 : i32
    %c0_i32_49 = arith.constant 0 : i32
    %64 = tpu.memref_slice %arg1[%6, %c0_i32_49] : memref<50x32xf32, #tpu.memory_space<any>> -> memref<1x32xf32, #tpu.memory_space<any>>
    %c6_i32_50 = arith.constant 6 : i32
    %c0_i32_51 = arith.constant 0 : i32
    %65 = tpu.memref_slice %arg8[%c6_i32_50, %c0_i32_51] : memref<8x32xf32, #tpu.memory_space<vmem>> -> memref<1x32xf32, #tpu.memory_space<vmem>>
    %66 = tpu.memref_slice %arg10[%c6_i32_48] : memref<8x!tpu.dma_semaphore, #tpu.memory_space<semaphore_mem>> -> memref<1x!tpu.dma_semaphore, #tpu.memory_space<semaphore_mem>>
    %67 = tpu.memref_squeeze %66 : memref<1x!tpu.dma_semaphore, #tpu.memory_space<semaphore_mem>> -> memref<!tpu.dma_semaphore, #tpu.memory_space<semaphore_mem>>
    tpu.wait_dma2 semaphore(%67 : memref<!tpu.dma_semaphore, #tpu.memory_space<semaphore_mem>>) src(%64 : memref<1x32xf32, #tpu.memory_space<any>>) dst(%65 : memref<1x32xf32, #tpu.memory_space<vmem>>)
    %c7_i32_52 = arith.constant 7 : i32
    %c0_i32_53 = arith.constant 0 : i32
    %68 = tpu.memref_slice %arg1[%7, %c0_i32_53] : memref<50x32xf32, #tpu.memory_space<any>> -> memref<1x32xf32, #tpu.memory_space<any>>
    %c7_i32_54 = arith.constant 7 : i32
    %c0_i32_55 = arith.constant 0 : i32
    %69 = tpu.memref_slice %arg8[%c7_i32_54, %c0_i32_55] : memref<8x32xf32, #tpu.memory_space<vmem>> -> memref<1x32xf32, #tpu.memory_space<vmem>>
    %70 = tpu.memref_slice %arg10[%c7_i32_52] : memref<8x!tpu.dma_semaphore, #tpu.memory_space<semaphore_mem>> -> memref<1x!tpu.dma_semaphore, #tpu.memory_space<semaphore_mem>>
    %71 = tpu.memref_squeeze %70 : memref<1x!tpu.dma_semaphore, #tpu.memory_space<semaphore_mem>> -> memref<!tpu.dma_semaphore, #tpu.memory_space<semaphore_mem>>
    tpu.wait_dma2 semaphore(%71 : memref<!tpu.dma_semaphore, #tpu.memory_space<semaphore_mem>>) src(%68 : memref<1x32xf32, #tpu.memory_space<any>>) dst(%69 : memref<1x32xf32, #tpu.memory_space<vmem>>)
    %c0_56 = arith.constant 0 : index
    %c0_57 = arith.constant 0 : index
    %72 = vector.load %arg8[%c0_56, %c0_57] : memref<8x32xf32, #tpu.memory_space<vmem>>, vector<8x32xf32>
    %c0_58 = arith.constant 0 : index
    %c0_59 = arith.constant 0 : index
    %73 = vector.load %arg2[%c0_58, %c0_59] : memref<32x128xf32, #tpu.memory_space<vmem>>, vector<32x128xf32>
    %cst = arith.constant dense<0.000000e+00> : vector<8x128xf32>
    %74 = tpu.matmul %72, %73, %cst {dimension_numbers = #tpu.dot_dimension_numbers<[1], [0], [0], [1], [0, 0, 1, 1], [], []>} : vector<8x32xf32>, vector<32x128xf32>, vector<8x128xf32> -> vector<8x128xf32>
    %c0_60 = arith.constant 0 : index
    %c0_61 = arith.constant 0 : index
    %75 = vector.load %arg4[%c0_60, %c0_61] : memref<1x128xf32, #tpu.memory_space<vmem>>, vector<1x128xf32>
    %76 = vector.broadcast %75 : vector<1x128xf32> to vector<8x128xf32>
    %77 = arith.addf %74, %76 : vector<8x128xf32>
    %c0_62 = arith.constant 0 : index
    %c0_63 = arith.constant 0 : index
    %78 = vector.load %arg3[%c0_62, %c0_63] : memref<32x128xf32, #tpu.memory_space<vmem>>, vector<32x128xf32>
    %cst_64 = arith.constant 0.000000e+00 : f32
    %79 = vector.broadcast %cst_64 : f32 to vector<1x32xf32>
    %cst_65 = arith.constant 0.000000e+00 : f32
    %80 = vector.broadcast %cst_65 : f32 to vector<1x32xf32>
    %81 = vector.extract_strided_slice %77 {offsets = [0, 0], sizes = [1, 128], strides = [1, 1]} : vector<8x128xf32> to vector<1x128xf32>
    %cst_66 = arith.constant dense<0.000000e+00> : vector<1x128xf32>
    %82 = tpu.matmul %79, %78, %cst_66 {dimension_numbers = #tpu.dot_dimension_numbers<[1], [0], [0], [1], [0, 0, 1, 1], [], []>} : vector<1x32xf32>, vector<32x128xf32>, vector<1x128xf32> -> vector<1x128xf32>
    %83 = arith.addf %81, %82 : vector<1x128xf32>
    %84 = arith.negf %83 : vector<1x128xf32>
    %85 = math.exp %84 : vector<1x128xf32>
    %cst_67 = arith.constant 1.000000e+00 : f32
    %86 = vector.broadcast %cst_67 : f32 to vector<1x128xf32>
    %87 = arith.addf %86, %85 : vector<1x128xf32>
    %88 = arith.divf %86, %87 : vector<1x128xf32>
    %89 = math.tanh %83 : vector<1x128xf32>
    %90 = vector.extract_strided_slice %88 {offsets = [0, 0], sizes = [1, 32], strides = [1, 1]} : vector<1x128xf32> to vector<1x32xf32>
    %91 = vector.extract_strided_slice %88 {offsets = [0, 32], sizes = [1, 32], strides = [1, 1]} : vector<1x128xf32> to vector<1x32xf32>
    %92 = vector.extract_strided_slice %89 {offsets = [0, 64], sizes = [1, 32], strides = [1, 1]} : vector<1x128xf32> to vector<1x32xf32>
    %93 = vector.extract_strided_slice %88 {offsets = [0, 96], sizes = [1, 32], strides = [1, 1]} : vector<1x128xf32> to vector<1x32xf32>
    %94 = arith.mulf %91, %80 : vector<1x32xf32>
    %95 = arith.mulf %90, %92 : vector<1x32xf32>
    %96 = arith.addf %94, %95 : vector<1x32xf32>
    %97 = math.tanh %96 : vector<1x32xf32>
    %98 = arith.mulf %93, %97 : vector<1x32xf32>
    %c0_68 = arith.constant 0 : index
    %c0_69 = arith.constant 0 : index
    %99 = vector.load %arg9[%c0_68, %c0_69] : memref<8x32xf32, #tpu.memory_space<vmem>>, vector<1x32xf32>
    tpu.vector_store %arg9[%c0_68, %c0_69], %98 {strides = array<i32>} : memref<8x32xf32, #tpu.memory_space<vmem>>, vector<1x32xf32>,
    %100 = vector.extract_strided_slice %77 {offsets = [1, 0], sizes = [1, 128], strides = [1, 1]} : vector<8x128xf32> to vector<1x128xf32>
    %cst_70 = arith.constant dense<0.000000e+00> : vector<1x128xf32>
    %101 = tpu.matmul %98, %78, %cst_70 {dimension_numbers = #tpu.dot_dimension_numbers<[1], [0], [0], [1], [0, 0, 1, 1], [], []>} : vector<1x32xf32>, vector<32x128xf32>, vector<1x128xf32> -> vector<1x128xf32>
    %102 = arith.addf %100, %101 : vector<1x128xf32>
    %103 = arith.negf %102 : vector<1x128xf32>
    %104 = math.exp %103 : vector<1x128xf32>
    %cst_71 = arith.constant 1.000000e+00 : f32
    %105 = vector.broadcast %cst_71 : f32 to vector<1x128xf32>
    %106 = arith.addf %105, %104 : vector<1x128xf32>
    %107 = arith.divf %105, %106 : vector<1x128xf32>
    %108 = math.tanh %102 : vector<1x128xf32>
    %109 = vector.extract_strided_slice %107 {offsets = [0, 0], sizes = [1, 32], strides = [1, 1]} : vector<1x128xf32> to vector<1x32xf32>
    %110 = vector.extract_strided_slice %107 {offsets = [0, 32], sizes = [1, 32], strides = [1, 1]} : vector<1x128xf32> to vector<1x32xf32>
    %111 = vector.extract_strided_slice %108 {offsets = [0, 64], sizes = [1, 32], strides = [1, 1]} : vector<1x128xf32> to vector<1x32xf32>
    %112 = vector.extract_strided_slice %107 {offsets = [0, 96], sizes = [1, 32], strides = [1, 1]} : vector<1x128xf32> to vector<1x32xf32>
    %113 = arith.mulf %110, %96 : vector<1x32xf32>
    %114 = arith.mulf %109, %111 : vector<1x32xf32>
    %115 = arith.addf %113, %114 : vector<1x32xf32>
    %116 = math.tanh %115 : vector<1x32xf32>
    %117 = arith.mulf %112, %116 : vector<1x32xf32>
    %c1_72 = arith.constant 1 : index
    %c0_73 = arith.constant 0 : index
    %118 = vector.load %arg9[%c1_72, %c0_73] : memref<8x32xf32, #tpu.memory_space<vmem>>, vector<1x32xf32>
    tpu.vector_store %arg9[%c1_72, %c0_73], %117 {strides = array<i32>} : memref<8x32xf32, #tpu.memory_space<vmem>>, vector<1x32xf32>,
    %119 = vector.extract_strided_slice %77 {offsets = [2, 0], sizes = [1, 128], strides = [1, 1]} : vector<8x128xf32> to vector<1x128xf32>
    %cst_74 = arith.constant dense<0.000000e+00> : vector<1x128xf32>
    %120 = tpu.matmul %117, %78, %cst_74 {dimension_numbers = #tpu.dot_dimension_numbers<[1], [0], [0], [1], [0, 0, 1, 1], [], []>} : vector<1x32xf32>, vector<32x128xf32>, vector<1x128xf32> -> vector<1x128xf32>
    %121 = arith.addf %119, %120 : vector<1x128xf32>
    %122 = arith.negf %121 : vector<1x128xf32>
    %123 = math.exp %122 : vector<1x128xf32>
    %cst_75 = arith.constant 1.000000e+00 : f32
    %124 = vector.broadcast %cst_75 : f32 to vector<1x128xf32>
    %125 = arith.addf %124, %123 : vector<1x128xf32>
    %126 = arith.divf %124, %125 : vector<1x128xf32>
    %127 = math.tanh %121 : vector<1x128xf32>
    %128 = vector.extract_strided_slice %126 {offsets = [0, 0], sizes = [1, 32], strides = [1, 1]} : vector<1x128xf32> to vector<1x32xf32>
    %129 = vector.extract_strided_slice %126 {offsets = [0, 32], sizes = [1, 32], strides = [1, 1]} : vector<1x128xf32> to vector<1x32xf32>
    %130 = vector.extract_strided_slice %127 {offsets = [0, 64], sizes = [1, 32], strides = [1, 1]} : vector<1x128xf32> to vector<1x32xf32>
    %131 = vector.extract_strided_slice %126 {offsets = [0, 96], sizes = [1, 32], strides = [1, 1]} : vector<1x128xf32> to vector<1x32xf32>
    %132 = arith.mulf %129, %115 : vector<1x32xf32>
    %133 = arith.mulf %128, %130 : vector<1x32xf32>
    %134 = arith.addf %132, %133 : vector<1x32xf32>
    %135 = math.tanh %134 : vector<1x32xf32>
    %136 = arith.mulf %131, %135 : vector<1x32xf32>
    %c2_76 = arith.constant 2 : index
    %c0_77 = arith.constant 0 : index
    %137 = vector.load %arg9[%c2_76, %c0_77] : memref<8x32xf32, #tpu.memory_space<vmem>>, vector<1x32xf32>
    tpu.vector_store %arg9[%c2_76, %c0_77], %136 {strides = array<i32>} : memref<8x32xf32, #tpu.memory_space<vmem>>, vector<1x32xf32>,
    %138 = vector.extract_strided_slice %77 {offsets = [3, 0], sizes = [1, 128], strides = [1, 1]} : vector<8x128xf32> to vector<1x128xf32>
    %cst_78 = arith.constant dense<0.000000e+00> : vector<1x128xf32>
    %139 = tpu.matmul %136, %78, %cst_78 {dimension_numbers = #tpu.dot_dimension_numbers<[1], [0], [0], [1], [0, 0, 1, 1], [], []>} : vector<1x32xf32>, vector<32x128xf32>, vector<1x128xf32> -> vector<1x128xf32>
    %140 = arith.addf %138, %139 : vector<1x128xf32>
    %141 = arith.negf %140 : vector<1x128xf32>
    %142 = math.exp %141 : vector<1x128xf32>
    %cst_79 = arith.constant 1.000000e+00 : f32
    %143 = vector.broadcast %cst_79 : f32 to vector<1x128xf32>
    %144 = arith.addf %143, %142 : vector<1x128xf32>
    %145 = arith.divf %143, %144 : vector<1x128xf32>
    %146 = math.tanh %140 : vector<1x128xf32>
    %147 = vector.extract_strided_slice %145 {offsets = [0, 0], sizes = [1, 32], strides = [1, 1]} : vector<1x128xf32> to vector<1x32xf32>
    %148 = vector.extract_strided_slice %145 {offsets = [0, 32], sizes = [1, 32], strides = [1, 1]} : vector<1x128xf32> to vector<1x32xf32>
    %149 = vector.extract_strided_slice %146 {offsets = [0, 64], sizes = [1, 32], strides = [1, 1]} : vector<1x128xf32> to vector<1x32xf32>
    %150 = vector.extract_strided_slice %145 {offsets = [0, 96], sizes = [1, 32], strides = [1, 1]} : vector<1x128xf32> to vector<1x32xf32>
    %151 = arith.mulf %148, %134 : vector<1x32xf32>
    %152 = arith.mulf %147, %149 : vector<1x32xf32>
    %153 = arith.addf %151, %152 : vector<1x32xf32>
    %154 = math.tanh %153 : vector<1x32xf32>
    %155 = arith.mulf %150, %154 : vector<1x32xf32>
    %c3_80 = arith.constant 3 : index
    %c0_81 = arith.constant 0 : index
    %156 = vector.load %arg9[%c3_80, %c0_81] : memref<8x32xf32, #tpu.memory_space<vmem>>, vector<1x32xf32>
    tpu.vector_store %arg9[%c3_80, %c0_81], %155 {strides = array<i32>} : memref<8x32xf32, #tpu.memory_space<vmem>>, vector<1x32xf32>,
    %157 = vector.extract_strided_slice %77 {offsets = [4, 0], sizes = [1, 128], strides = [1, 1]} : vector<8x128xf32> to vector<1x128xf32>
    %cst_82 = arith.constant dense<0.000000e+00> : vector<1x128xf32>
    %158 = tpu.matmul %155, %78, %cst_82 {dimension_numbers = #tpu.dot_dimension_numbers<[1], [0], [0], [1], [0, 0, 1, 1], [], []>} : vector<1x32xf32>, vector<32x128xf32>, vector<1x128xf32> -> vector<1x128xf32>
    %159 = arith.addf %157, %158 : vector<1x128xf32>
    %160 = arith.negf %159 : vector<1x128xf32>
    %161 = math.exp %160 : vector<1x128xf32>
    %cst_83 = arith.constant 1.000000e+00 : f32
    %162 = vector.broadcast %cst_83 : f32 to vector<1x128xf32>
    %163 = arith.addf %162, %161 : vector<1x128xf32>
    %164 = arith.divf %162, %163 : vector<1x128xf32>
    %165 = math.tanh %159 : vector<1x128xf32>
    %166 = vector.extract_strided_slice %164 {offsets = [0, 0], sizes = [1, 32], strides = [1, 1]} : vector<1x128xf32> to vector<1x32xf32>
    %167 = vector.extract_strided_slice %164 {offsets = [0, 32], sizes = [1, 32], strides = [1, 1]} : vector<1x128xf32> to vector<1x32xf32>
    %168 = vector.extract_strided_slice %165 {offsets = [0, 64], sizes = [1, 32], strides = [1, 1]} : vector<1x128xf32> to vector<1x32xf32>
    %169 = vector.extract_strided_slice %164 {offsets = [0, 96], sizes = [1, 32], strides = [1, 1]} : vector<1x128xf32> to vector<1x32xf32>
    %170 = arith.mulf %167, %153 : vector<1x32xf32>
    %171 = arith.mulf %166, %168 : vector<1x32xf32>
    %172 = arith.addf %170, %171 : vector<1x32xf32>
    %173 = math.tanh %172 : vector<1x32xf32>
    %174 = arith.mulf %169, %173 : vector<1x32xf32>
    %c4_84 = arith.constant 4 : index
    %c0_85 = arith.constant 0 : index
    %175 = vector.load %arg9[%c4_84, %c0_85] : memref<8x32xf32, #tpu.memory_space<vmem>>, vector<1x32xf32>
    tpu.vector_store %arg9[%c4_84, %c0_85], %174 {strides = array<i32>} : memref<8x32xf32, #tpu.memory_space<vmem>>, vector<1x32xf32>,
    %176 = vector.extract_strided_slice %77 {offsets = [5, 0], sizes = [1, 128], strides = [1, 1]} : vector<8x128xf32> to vector<1x128xf32>
    %cst_86 = arith.constant dense<0.000000e+00> : vector<1x128xf32>
    %177 = tpu.matmul %174, %78, %cst_86 {dimension_numbers = #tpu.dot_dimension_numbers<[1], [0], [0], [1], [0, 0, 1, 1], [], []>} : vector<1x32xf32>, vector<32x128xf32>, vector<1x128xf32> -> vector<1x128xf32>
    %178 = arith.addf %176, %177 : vector<1x128xf32>
    %179 = arith.negf %178 : vector<1x128xf32>
    %180 = math.exp %179 : vector<1x128xf32>
    %cst_87 = arith.constant 1.000000e+00 : f32
    %181 = vector.broadcast %cst_87 : f32 to vector<1x128xf32>
    %182 = arith.addf %181, %180 : vector<1x128xf32>
    %183 = arith.divf %181, %182 : vector<1x128xf32>
    %184 = math.tanh %178 : vector<1x128xf32>
    %185 = vector.extract_strided_slice %183 {offsets = [0, 0], sizes = [1, 32], strides = [1, 1]} : vector<1x128xf32> to vector<1x32xf32>
    %186 = vector.extract_strided_slice %183 {offsets = [0, 32], sizes = [1, 32], strides = [1, 1]} : vector<1x128xf32> to vector<1x32xf32>
    %187 = vector.extract_strided_slice %184 {offsets = [0, 64], sizes = [1, 32], strides = [1, 1]} : vector<1x128xf32> to vector<1x32xf32>
    %188 = vector.extract_strided_slice %183 {offsets = [0, 96], sizes = [1, 32], strides = [1, 1]} : vector<1x128xf32> to vector<1x32xf32>
    %189 = arith.mulf %186, %172 : vector<1x32xf32>
    %190 = arith.mulf %185, %187 : vector<1x32xf32>
    %191 = arith.addf %189, %190 : vector<1x32xf32>
    %192 = math.tanh %191 : vector<1x32xf32>
    %193 = arith.mulf %188, %192 : vector<1x32xf32>
    %c5_88 = arith.constant 5 : index
    %c0_89 = arith.constant 0 : index
    %194 = vector.load %arg9[%c5_88, %c0_89] : memref<8x32xf32, #tpu.memory_space<vmem>>, vector<1x32xf32>
    tpu.vector_store %arg9[%c5_88, %c0_89], %193 {strides = array<i32>} : memref<8x32xf32, #tpu.memory_space<vmem>>, vector<1x32xf32>,
    %195 = vector.extract_strided_slice %77 {offsets = [6, 0], sizes = [1, 128], strides = [1, 1]} : vector<8x128xf32> to vector<1x128xf32>
    %cst_90 = arith.constant dense<0.000000e+00> : vector<1x128xf32>
    %196 = tpu.matmul %193, %78, %cst_90 {dimension_numbers = #tpu.dot_dimension_numbers<[1], [0], [0], [1], [0, 0, 1, 1], [], []>} : vector<1x32xf32>, vector<32x128xf32>, vector<1x128xf32> -> vector<1x128xf32>
    %197 = arith.addf %195, %196 : vector<1x128xf32>
    %198 = arith.negf %197 : vector<1x128xf32>
    %199 = math.exp %198 : vector<1x128xf32>
    %cst_91 = arith.constant 1.000000e+00 : f32
    %200 = vector.broadcast %cst_91 : f32 to vector<1x128xf32>
    %201 = arith.addf %200, %199 : vector<1x128xf32>
    %202 = arith.divf %200, %201 : vector<1x128xf32>
    %203 = math.tanh %197 : vector<1x128xf32>
    %204 = vector.extract_strided_slice %202 {offsets = [0, 0], sizes = [1, 32], strides = [1, 1]} : vector<1x128xf32> to vector<1x32xf32>
    %205 = vector.extract_strided_slice %202 {offsets = [0, 32], sizes = [1, 32], strides = [1, 1]} : vector<1x128xf32> to vector<1x32xf32>
    %206 = vector.extract_strided_slice %203 {offsets = [0, 64], sizes = [1, 32], strides = [1, 1]} : vector<1x128xf32> to vector<1x32xf32>
    %207 = vector.extract_strided_slice %202 {offsets = [0, 96], sizes = [1, 32], strides = [1, 1]} : vector<1x128xf32> to vector<1x32xf32>
    %208 = arith.mulf %205, %191 : vector<1x32xf32>
    %209 = arith.mulf %204, %206 : vector<1x32xf32>
    %210 = arith.addf %208, %209 : vector<1x32xf32>
    %211 = math.tanh %210 : vector<1x32xf32>
    %212 = arith.mulf %207, %211 : vector<1x32xf32>
    %c6_92 = arith.constant 6 : index
    %c0_93 = arith.constant 0 : index
    %213 = vector.load %arg9[%c6_92, %c0_93] : memref<8x32xf32, #tpu.memory_space<vmem>>, vector<1x32xf32>
    tpu.vector_store %arg9[%c6_92, %c0_93], %212 {strides = array<i32>} : memref<8x32xf32, #tpu.memory_space<vmem>>, vector<1x32xf32>,
    %214 = vector.extract_strided_slice %77 {offsets = [7, 0], sizes = [1, 128], strides = [1, 1]} : vector<8x128xf32> to vector<1x128xf32>
    %cst_94 = arith.constant dense<0.000000e+00> : vector<1x128xf32>
    %215 = tpu.matmul %212, %78, %cst_94 {dimension_numbers = #tpu.dot_dimension_numbers<[1], [0], [0], [1], [0, 0, 1, 1], [], []>} : vector<1x32xf32>, vector<32x128xf32>, vector<1x128xf32> -> vector<1x128xf32>
    %216 = arith.addf %214, %215 : vector<1x128xf32>
    %217 = arith.negf %216 : vector<1x128xf32>
    %218 = math.exp %217 : vector<1x128xf32>
    %cst_95 = arith.constant 1.000000e+00 : f32
    %219 = vector.broadcast %cst_95 : f32 to vector<1x128xf32>
    %220 = arith.addf %219, %218 : vector<1x128xf32>
    %221 = arith.divf %219, %220 : vector<1x128xf32>
    %222 = math.tanh %216 : vector<1x128xf32>
    %223 = vector.extract_strided_slice %221 {offsets = [0, 0], sizes = [1, 32], strides = [1, 1]} : vector<1x128xf32> to vector<1x32xf32>
    %224 = vector.extract_strided_slice %221 {offsets = [0, 32], sizes = [1, 32], strides = [1, 1]} : vector<1x128xf32> to vector<1x32xf32>
    %225 = vector.extract_strided_slice %222 {offsets = [0, 64], sizes = [1, 32], strides = [1, 1]} : vector<1x128xf32> to vector<1x32xf32>
    %226 = vector.extract_strided_slice %221 {offsets = [0, 96], sizes = [1, 32], strides = [1, 1]} : vector<1x128xf32> to vector<1x32xf32>
    %227 = arith.mulf %224, %210 : vector<1x32xf32>
    %228 = arith.mulf %223, %225 : vector<1x32xf32>
    %229 = arith.addf %227, %228 : vector<1x32xf32>
    %230 = math.tanh %229 : vector<1x32xf32>
    %231 = arith.mulf %226, %230 : vector<1x32xf32>
    %c7_96 = arith.constant 7 : index
    %c0_97 = arith.constant 0 : index
    %232 = vector.load %arg9[%c7_96, %c0_97] : memref<8x32xf32, #tpu.memory_space<vmem>>, vector<1x32xf32>
    tpu.vector_store %arg9[%c7_96, %c0_97], %231 {strides = array<i32>} : memref<8x32xf32, #tpu.memory_space<vmem>>, vector<1x32xf32>,
    %c0_98 = arith.constant 0 : index
    %c0_99 = arith.constant 0 : index
    %233 = vector.load %arg9[%c0_98, %c0_99] : memref<8x32xf32, #tpu.memory_space<vmem>>, vector<8x32xf32>
    %c0_100 = arith.constant 0 : index
    %c0_101 = arith.constant 0 : index
    %234 = vector.load %arg5[%c0_100, %c0_101] : memref<32x128xf32, #tpu.memory_space<vmem>>, vector<32x128xf32>
    %cst_102 = arith.constant dense<0.000000e+00> : vector<8x128xf32>
    %235 = tpu.matmul %233, %234, %cst_102 {dimension_numbers = #tpu.dot_dimension_numbers<[1], [0], [0], [1], [0, 0, 1, 1], [], []>} : vector<8x32xf32>, vector<32x128xf32>, vector<8x128xf32> -> vector<8x128xf32>
    %c0_103 = arith.constant 0 : index
    %c0_104 = arith.constant 0 : index
    %236 = vector.load %arg6[%c0_103, %c0_104] : memref<1x128xf32, #tpu.memory_space<vmem>>, vector<1x128xf32>
    %237 = vector.broadcast %236 : vector<1x128xf32> to vector<8x128xf32>
    %238 = arith.addf %235, %237 : vector<8x128xf32>
    %cst_105 = arith.constant dense<0xFF800000> : vector<8xf32>
    %239 = vector.multi_reduction <maximumf>, %238, %cst_105 [1] : vector<8x128xf32> to vector<8xf32>
    %240 = vector.shape_cast %239 : vector<8xf32> to vector<8x1xf32>
    %241 = vector.broadcast %240 : vector<8x1xf32> to vector<8x128xf32>
    %242 = arith.subf %238, %241 : vector<8x128xf32>
    %243 = math.exp %242 : vector<8x128xf32>
    %cst_106 = arith.constant dense<0.000000e+00> : vector<8xf32>
    %244 = vector.multi_reduction <add>, %243, %cst_106 [1] : vector<8x128xf32> to vector<8xf32>
    %245 = vector.shape_cast %244 : vector<8xf32> to vector<8x1xf32>
    %246 = math.log %245 : vector<8x1xf32>
    %247 = arith.addf %240, %246 : vector<8x1xf32>
    %248 = vector.broadcast %247 : vector<8x1xf32> to vector<8x128xf32>
    %249 = arith.subf %238, %248 : vector<8x128xf32>
    %c0_107 = arith.constant 0 : index
    %c0_108 = arith.constant 0 : index
    %250 = vector.load %arg7[%c0_107, %c0_108] : memref<8x128xf32, #tpu.memory_space<vmem>>, vector<8x128xf32>
    tpu.vector_store %arg7[%c0_107, %c0_108], %249 {strides = array<i32>} : memref<8x128xf32, #tpu.memory_space<vmem>>, vector<8x128xf32>,
    return
  }
}

</mosaic_0001>

<llo_original>
// kernel: tpu_custom_call.1
$region0: #{tpu_custom_call.1}
  #allocation0 [shape = 'u32[]', space=smem, size = 0x4, offset = 0x4, fixed_abs, tag = 'smem constant byte address 0x4 - core index']
  #allocation1 [shape = 'u32[144,128]{1,0:T(1,128)}', space=vmem, size = 0x12000, scoped, tag = 'internal scratch']
  #allocation2 [shape = 'f32[8,32]{1,0:T(8,128)}', space=vmem, size = 0x1000, scoped, tag = 'scratch operand']
  #allocation3 [shape = 'f32[8,32]{1,0:T(8,128)}', space=vmem, size = 0x1000, scoped, tag = 'scratch operand']
  #allocation4 [shape = 's32[8]{0}', space=sflag, size = 0x20, scoped, tag = 'scratch operand']
  #allocation9 [shape = 's32[]', space=sflag, size = 0x4, offset = 0, fixed_abs, tag = 'sflag constant byte address 0x0 - dummy sync flag']
  #allocation10 [shape = 's32[]', space=sflag, size = 0x4, offset = 0, fixed_abs, tag = 'sflag constant byte address 0x0 - dummy sync flag']
  #allocation11 [shape = 's32[]', space=sflag, size = 0x4, offset = 0, fixed_abs, tag = 'sflag constant byte address 0x0 - dummy sync flag']
  #allocation12 [shape = 's32[]', space=sflag, size = 0x4, offset = 0, fixed_abs, tag = 'sflag constant byte address 0x0 - dummy sync flag']
  #allocation13 [shape = 's32[]', space=sflag, size = 0x4, offset = 0, fixed_abs, tag = 'sflag constant byte address 0x0 - dummy sync flag']
  #allocation14 [shape = 's32[]', space=sflag, size = 0x4, offset = 0, fixed_abs, tag = 'sflag constant byte address 0x0 - dummy sync flag']
  #allocation15 [shape = 's32[]', space=sflag, size = 0x4, offset = 0, fixed_abs, tag = 'sflag constant byte address 0x0 - dummy sync flag']
  #allocation16 [shape = 's32[]', space=sflag, size = 0x4, offset = 0, fixed_abs, tag = 'sflag constant byte address 0x0 - dummy sync flag']
  %s0 = inlined_call_operand.vmem [shape: s32[8], index: 0, kind: input, shape index: {}]
  %s1 = inlined_call_operand.vmem [shape: f32[50,32], index: 1, kind: input, shape index: {}]
  %s2 = inlined_call_operand.vmem [shape: f32[32,128], index: 2, kind: input, shape index: {}]
  %s3 = inlined_call_operand.vmem [shape: f32[32,128], index: 3, kind: input, shape index: {}]
  %s4 = inlined_call_operand.vmem [shape: f32[1,128], index: 4, kind: input, shape index: {}]
  %s5 = inlined_call_operand.vmem [shape: f32[32,128], index: 5, kind: input, shape index: {}]
  %s6 = inlined_call_operand.vmem [shape: f32[1,128], index: 6, kind: input, shape index: {}]
  %s7 = inlined_call_operand.hbm [shape: f32[8,128], index: 7, kind: output, shape index: {}]
  %s8 = sld [smem:[#allocation0]]
  $region278: #{tpu_custom_call.1} parent=0
    _
  %s10 = ssub.s32 1, %s8
  %s11 = scalar_select 0, %s10, %s8
  $region1: #{tpu_custom_call.1} parent=0
    #allocation5 [shape = 'u8[512]{0}', space=smem, size = 0x200, scoped, tag = 'input window, operand 0, single buffered']
    #allocation6 [shape = 's32[1]{0}', space=sflag, size = 0x4, scoped, tag = 'scoped memory for tpu_custom_call.1']
    #allocation7 [shape = 's32[1]{0}', space=sflag, size = 0x4, scoped, tag = 'scoped memory for tpu_custom_call.1']
    #allocation8 [shape = 'u8[4096]{0}', space=vmem, size = 0x1000, scoped, tag = 'output window, operand 0, single buffered']
    %12 = vsyncpa [#allocation7], 0
    %13 = vsyncpa [#allocation6], 0
    // Predicated region
    $region2: #{tpu_custom_call.1} parent=1 // pred_check
      _
    $region3: #{tpu_custom_call.1} parent=1 // pred_check_branch
      %15 = sbr.rel (0) target = $region5
    $region4: #{tpu_custom_call.1} parent=1 // pred_region
      %s17 = ssub.s32 16, 16
      %18 = vsyncadd [#allocation7], %s17
      %s20 = sshll.u32 %s0, 4
      %s21 = int_to_ptr.vmem [resolvable:$true] %s20
      %23 = dma.vmem_to_smem %s21, 16, [#allocation5], [#allocation7]
    $region5: #{tpu_custom_call.1} parent=1 // pred_fallthru
      _
    // Predicated region
    $region6: #{tpu_custom_call.1} parent=1 // pred_check
      _
    $region7: #{tpu_custom_call.1} parent=1 // pred_check_branch
      %25 = sbr.rel (0) target = $region9
    $region8: #{tpu_custom_call.1} parent=1 // pred_region
      _
    $region9: #{tpu_custom_call.1} parent=1 // pred_fallthru
      _
    // Predicated region
    $region10: #{tpu_custom_call.1} parent=1 // pred_check
      _
    $region11: #{tpu_custom_call.1} parent=1 // pred_check_branch
      %27 = sbr.rel (0) target = $region13
    $region12: #{tpu_custom_call.1} parent=1 // pred_region
      _
    $region13: #{tpu_custom_call.1} parent=1 // pred_fallthru
      _
    // Predicated region
    $region14: #{tpu_custom_call.1} parent=1 // pred_check
      _
    $region15: #{tpu_custom_call.1} parent=1 // pred_check_branch
      %29 = sbr.rel (0) target = $region17
    $region16: #{tpu_custom_call.1} parent=1 // pred_region
      _
    $region17: #{tpu_custom_call.1} parent=1 // pred_fallthru
      _
    // Predicated region
    $region18: #{tpu_custom_call.1} parent=1 // pred_check
      _
    $region19: #{tpu_custom_call.1} parent=1 // pred_check_branch
      %31 = sbr.rel (0) target = $region21
    $region20: #{tpu_custom_call.1} parent=1 // pred_region
      _
    $region21: #{tpu_custom_call.1} parent=1 // pred_fallthru
      _
    // Predicated region
    $region22: #{tpu_custom_call.1} parent=1 // pred_check
      _
    $region23: #{tpu_custom_call.1} parent=1 // pred_check_branch
      %33 = sbr.rel (0) target = $region25
    $region24: #{tpu_custom_call.1} parent=1 // pred_region
      _
    $region25: #{tpu_custom_call.1} parent=1 // pred_fallthru
      _
    // Predicated region
    $region26: #{tpu_custom_call.1} parent=1 // pred_check
      _
    $region27: #{tpu_custom_call.1} parent=1 // pred_check_branch
      %35 = sbr.rel (0) target = $region29
    $region28: #{tpu_custom_call.1} parent=1 // pred_region
      %36 = dma.done [#allocation7], 16
    $region29: #{tpu_custom_call.1} parent=1 // pred_fallthru
      _
    %37 = sfence
    %s38 = sld [smem:[#allocation5]]
    %s39 = sld [smem:[#allocation5 + $0x1]]
    %s40 = sld [smem:[#allocation5 + $0x2]]
    %s41 = sld [smem:[#allocation5 + $0x3]]
    %s42 = sld [smem:[#allocation5 + $0x4]]
    %s43 = sld [smem:[#allocation5 + $0x5]]
    %s44 = sld [smem:[#allocation5 + $0x6]]
    %s45 = sld [smem:[#allocation5 + $0x7]]
    %s46 = scalar_lea.vmem %s1, %s38
    %p48 = scmp.lt.u32.totalorder 1, 8
    %p49 = pneg %p48
    // Predicated region
    $region30: #{tpu_custom_call.1} parent=1 // pred_check
      _
    $region31: #{tpu_custom_call.1} parent=1 // pred_check_branch
      %51 = sbr.rel (%p48) target = $region33
    $region32: #{tpu_custom_call.1} parent=1 // pred_region
      %s66 = sand.u32 1, 7
      %p67 = scmp.eq.s32.totalorder %s66, 0
      %p68 = pneg %p67
      // Predicated region
      $region45: #{tpu_custom_call.1} parent=32 // pred_check
        _
      $region46: #{tpu_custom_call.1} parent=32 // pred_check_branch
        %70 = sbr.rel (%p67) target = $region48
      $region47: #{tpu_custom_call.1} parent=32 // pred_region
        %s71 = sand.u32 1, 7
        %s72 = ssub.s32 1, %s71
        %s73 = scalar_lea.vmem %s46, %s72
        %s74 = ssub.s32 1, %s71
        %s75 = scalar_lea.vmem [#allocation2], %s74
        %s76 = sshllo.u32 0, %s71
        loop: start=0, step=1, limit=1
        $region49: #{tpu_custom_call.1} parent=47 // loop_pre_header
          _
        $region50: #{tpu_custom_call.1} parent=47 // loop_header
          %s78 = sphi 0, %s82
          %p79 = scmp.ge.s32.totalorder %s78, 1
          %s83 = sphi %s73, %s73
          %s84 = sphi %s75, %s75
        $region51: #{tpu_custom_call.1} parent=47 // loop_header_branch
          %81 = sbr.rel (%p79) target = $region55
        $region52: #{tpu_custom_call.1} parent=47 // loop_body
          %v85 = vld [vmem:[%s83] sm:%s76]
          %86 = vst [vmem:[%s84] sm:%s76] %v85
        $region53: #{tpu_custom_call.1} parent=47 // loop_footer
          %s82 = sadd.s32 1, %s78
        $region54: #{tpu_custom_call.1} parent=47 // loop_footer_branch
          %77 = sbr.rel target = $region50
        $region55: #{tpu_custom_call.1} parent=47 // loop_exit
          _
      $region48: #{tpu_custom_call.1} parent=32 // pred_fallthru
        _
    $region33: #{tpu_custom_call.1} parent=1 // pred_fallthru
      _
    // Predicated region
    $region34: #{tpu_custom_call.1} parent=1 // pred_check
      %p52 = pneg %p48
    $region35: #{tpu_custom_call.1} parent=1 // pred_check_branch
      %54 = sbr.rel (%p52) target = $region37
    $region36: #{tpu_custom_call.1} parent=1 // pred_region
      %s55 = sshllo.u32 0, 1
      loop: start=0, step=1, limit=1
      $region38: #{tpu_custom_call.1} parent=36 // loop_pre_header
        _
      $region39: #{tpu_custom_call.1} parent=36 // loop_header
        %s57 = sphi 0, %s61
        %p58 = scmp.ge.s32.totalorder %s57, 1
        %s62 = sphi %s46, %s46
        %s63 = sphi [#allocation2], [#allocation2]
      $region40: #{tpu_custom_call.1} parent=36 // loop_header_branch
        %60 = sbr.rel (%p58) target = $region44
      $region41: #{tpu_custom_call.1} parent=36 // loop_body
        %v64 = vld [vmem:[%s62] sm:%s55]
        %65 = vst [vmem:[%s63] sm:%s55] %v64
      $region42: #{tpu_custom_call.1} parent=36 // loop_footer
        %s61 = sadd.s32 1, %s57
      $region43: #{tpu_custom_call.1} parent=36 // loop_footer_branch
        %56 = sbr.rel target = $region39
      $region44: #{tpu_custom_call.1} parent=36 // loop_exit
        _
    $region37: #{tpu_custom_call.1} parent=1 // pred_fallthru
      _
    // Predicated region
    $region56: #{tpu_custom_call.1} parent=1 // pred_check
      _
    $region57: #{tpu_custom_call.1} parent=1 // pred_check_branch
      %89 = sbr.rel (0) target = $region59
    $region58: #{tpu_custom_call.1} parent=1 // pred_region
      %90 = vsyncadd [#allocation4], 16
    $region59: #{tpu_custom_call.1} parent=1 // pred_fallthru
      _
    %s91 = scalar_lea.vmem %s1, %s39
    %s92 = scalar_lea.vmem [#allocation2], 1
    %s93 = scalar_lea.sflag [#allocation4], 1
    %p95 = scmp.lt.u32.totalorder 1, 8
    %p96 = pneg %p95
    // Predicated region
    $region60: #{tpu_custom_call.1} parent=1 // pred_check
      _
    $region61: #{tpu_custom_call.1} parent=1 // pred_check_branch
      %98 = sbr.rel (%p95) target = $region63
    $region62: #{tpu_custom_call.1} parent=1 // pred_region
      %s113 = sand.u32 1, 7
      %p114 = scmp.eq.s32.totalorder %s113, 0
      %p115 = pneg %p114
      // Predicated region
      $region75: #{tpu_custom_call.1} parent=62 // pred_check
        _
      $region76: #{tpu_custom_call.1} parent=62 // pred_check_branch
        %117 = sbr.rel (%p114) target = $region78
      $region77: #{tpu_custom_call.1} parent=62 // pred_region
        %s118 = sand.u32 1, 7
        %s119 = ssub.s32 1, %s118
        %s120 = scalar_lea.vmem %s91, %s119
        %s121 = ssub.s32 1, %s118
        %s122 = scalar_lea.vmem %s92, %s121 [#allocation2]
        %s123 = sshllo.u32 0, %s118
        loop: start=0, step=1, limit=1
        $region79: #{tpu_custom_call.1} parent=77 // loop_pre_header
          _
        $region80: #{tpu_custom_call.1} parent=77 // loop_header
          %s125 = sphi 0, %s129
          %p126 = scmp.ge.s32.totalorder %s125, 1
          %s130 = sphi %s120, %s120
          %s131 = sphi %s122, %s122
        $region81: #{tpu_custom_call.1} parent=77 // loop_header_branch
          %128 = sbr.rel (%p126) target = $region85
        $region82: #{tpu_custom_call.1} parent=77 // loop_body
          %v132 = vld [vmem:[%s130] sm:%s123]
          %133 = vst [vmem:[%s131] sm:%s123] %v132
        $region83: #{tpu_custom_call.1} parent=77 // loop_footer
          %s129 = sadd.s32 1, %s125
        $region84: #{tpu_custom_call.1} parent=77 // loop_footer_branch
          %124 = sbr.rel target = $region80
        $region85: #{tpu_custom_call.1} parent=77 // loop_exit
          _
      $region78: #{tpu_custom_call.1} parent=62 // pred_fallthru
        _
    $region63: #{tpu_custom_call.1} parent=1 // pred_fallthru
      _
    // Predicated region
    $region64: #{tpu_custom_call.1} parent=1 // pred_check
      %p99 = pneg %p95
    $region65: #{tpu_custom_call.1} parent=1 // pred_check_branch
      %101 = sbr.rel (%p99) target = $region67
    $region66: #{tpu_custom_call.1} parent=1 // pred_region
      %s102 = sshllo.u32 0, 1
      loop: start=0, step=1, limit=1
      $region68: #{tpu_custom_call.1} parent=66 // loop_pre_header
        _
      $region69: #{tpu_custom_call.1} parent=66 // loop_header
        %s104 = sphi 0, %s108
        %p105 = scmp.ge.s32.totalorder %s104, 1
        %s109 = sphi %s91, %s91
        %s110 = sphi %s92, %s92
      $region70: #{tpu_custom_call.1} parent=66 // loop_header_branch
        %107 = sbr.rel (%p105) target = $region74
      $region71: #{tpu_custom_call.1} parent=66 // loop_body
        %v111 = vld [vmem:[%s109] sm:%s102]
        %112 = vst [vmem:[%s110] sm:%s102] %v111
      $region72: #{tpu_custom_call.1} parent=66 // loop_footer
        %s108 = sadd.s32 1, %s104
      $region73: #{tpu_custom_call.1} parent=66 // loop_footer_branch
        %103 = sbr.rel target = $region69
      $region74: #{tpu_custom_call.1} parent=66 // loop_exit
        _
    $region67: #{tpu_custom_call.1} parent=1 // pred_fallthru
      _
    // Predicated region
    $region86: #{tpu_custom_call.1} parent=1 // pred_check
      _
    $region87: #{tpu_custom_call.1} parent=1 // pred_check_branch
      %136 = sbr.rel (0) target = $region89
    $region88: #{tpu_custom_call.1} parent=1 // pred_region
      %137 = vsyncadd %s93, 16
    $region89: #{tpu_custom_call.1} parent=1 // pred_fallthru
      _
    %s138 = scalar_lea.vmem %s1, %s40
    %s139 = scalar_lea.vmem [#allocation2], 2
    %s140 = scalar_lea.sflag [#allocation4], 2
    %p142 = scmp.lt.u32.totalorder 1, 8
    %p143 = pneg %p142
    // Predicated region
    $region90: #{tpu_custom_call.1} parent=1 // pred_check
      _
    $region91: #{tpu_custom_call.1} parent=1 // pred_check_branch
      %145 = sbr.rel (%p142) target = $region93
    $region92: #{tpu_custom_call.1} parent=1 // pred_region
      %s160 = sand.u32 1, 7
      %p161 = scmp.eq.s32.totalorder %s160, 0
      %p162 = pneg %p161
      // Predicated region
      $region105: #{tpu_custom_call.1} parent=92 // pred_check
        _
      $region106: #{tpu_custom_call.1} parent=92 // pred_check_branch
        %164 = sbr.rel (%p161) target = $region108
      $region107: #{tpu_custom_call.1} parent=92 // pred_region
        %s165 = sand.u32 1, 7
        %s166 = ssub.s32 1, %s165
        %s167 = scalar_lea.vmem %s138, %s166
        %s168 = ssub.s32 1, %s165
        %s169 = scalar_lea.vmem %s139, %s168 [#allocation2]
        %s170 = sshllo.u32 0, %s165
        loop: start=0, step=1, limit=1
        $region109: #{tpu_custom_call.1} parent=107 // loop_pre_header
          _
        $region110: #{tpu_custom_call.1} parent=107 // loop_header
          %s172 = sphi 0, %s176
          %p173 = scmp.ge.s32.totalorder %s172, 1
          %s177 = sphi %s167, %s167
          %s178 = sphi %s169, %s169
        $region111: #{tpu_custom_call.1} parent=107 // loop_header_branch
          %175 = sbr.rel (%p173) target = $region115
        $region112: #{tpu_custom_call.1} parent=107 // loop_body
          %v179 = vld [vmem:[%s177] sm:%s170]
          %180 = vst [vmem:[%s178] sm:%s170] %v179
        $region113: #{tpu_custom_call.1} parent=107 // loop_footer
          %s176 = sadd.s32 1, %s172
        $region114: #{tpu_custom_call.1} parent=107 // loop_footer_branch
          %171 = sbr.rel target = $region110
        $region115: #{tpu_custom_call.1} parent=107 // loop_exit
          _
      $region108: #{tpu_custom_call.1} parent=92 // pred_fallthru
        _
    $region93: #{tpu_custom_call.1} parent=1 // pred_fallthru
      _
    // Predicated region
    $region94: #{tpu_custom_call.1} parent=1 // pred_check
      %p146 = pneg %p142
    $region95: #{tpu_custom_call.1} parent=1 // pred_check_branch
      %148 = sbr.rel (%p146) target = $region97
    $region96: #{tpu_custom_call.1} parent=1 // pred_region
      %s149 = sshllo.u32 0, 1
      loop: start=0, step=1, limit=1
      $region98: #{tpu_custom_call.1} parent=96 // loop_pre_header
        _
      $region99: #{tpu_custom_call.1} parent=96 // loop_header
        %s151 = sphi 0, %s155
        %p152 = scmp.ge.s32.totalorder %s151, 1
        %s156 = sphi %s138, %s138
        %s157 = sphi %s139, %s139
      $region100: #{tpu_custom_call.1} parent=96 // loop_header_branch
        %154 = sbr.rel (%p152) target = $region104
      $region101: #{tpu_custom_call.1} parent=96 // loop_body
        %v158 = vld [vmem:[%s156] sm:%s149]
        %159 = vst [vmem:[%s157] sm:%s149] %v158
      $region102: #{tpu_custom_call.1} parent=96 // loop_footer
        %s155 = sadd.s32 1, %s151
      $region103: #{tpu_custom_call.1} parent=96 // loop_footer_branch
        %150 = sbr.rel target = $region99
      $region104: #{tpu_custom_call.1} parent=96 // loop_exit
        _
    $region97: #{tpu_custom_call.1} parent=1 // pred_fallthru
      _
    // Predicated region
    $region116: #{tpu_custom_call.1} parent=1 // pred_check
      _
    $region117: #{tpu_custom_call.1} parent=1 // pred_check_branch
      %183 = sbr.rel (0) target = $region119
    $region118: #{tpu_custom_call.1} parent=1 // pred_region
      %184 = vsyncadd %s140, 16
    $region119: #{tpu_custom_call.1} parent=1 // pred_fallthru
      _
    %s185 = scalar_lea.vmem %s1, %s41
    %s186 = scalar_lea.vmem [#allocation2], 3
    %s187 = scalar_lea.sflag [#allocation4], 3
    %p189 = scmp.lt.u32.totalorder 1, 8
    %p190 = pneg %p189
    // Predicated region
    $region120: #{tpu_custom_call.1} parent=1 // pred_check
      _
    $region121: #{tpu_custom_call.1} parent=1 // pred_check_branch
      %192 = sbr.rel (%p189) target = $region123
    $region122: #{tpu_custom_call.1} parent=1 // pred_region
      %s207 = sand.u32 1, 7
      %p208 = scmp.eq.s32.totalorder %s207, 0
      %p209 = pneg %p208
      // Predicated region
      $region135: #{tpu_custom_call.1} parent=122 // pred_check
        _
      $region136: #{tpu_custom_call.1} parent=122 // pred_check_branch
        %211 = sbr.rel (%p208) target = $region138
      $region137: #{tpu_custom_call.1} parent=122 // pred_region
        %s212 = sand.u32 1, 7
        %s213 = ssub.s32 1, %s212
        %s214 = scalar_lea.vmem %s185, %s213
        %s215 = ssub.s32 1, %s212
        %s216 = scalar_lea.vmem %s186, %s215 [#allocation2]
        %s217 = sshllo.u32 0, %s212
        loop: start=0, step=1, limit=1
        $region139: #{tpu_custom_call.1} parent=137 // loop_pre_header
          _
        $region140: #{tpu_custom_call.1} parent=137 // loop_header
          %s219 = sphi 0, %s223
          %p220 = scmp.ge.s32.totalorder %s219, 1
          %s224 = sphi %s214, %s214
          %s225 = sphi %s216, %s216
        $region141: #{tpu_custom_call.1} parent=137 // loop_header_branch
          %222 = sbr.rel (%p220) target = $region145
        $region142: #{tpu_custom_call.1} parent=137 // loop_body
          %v226 = vld [vmem:[%s224] sm:%s217]
          %227 = vst [vmem:[%s225] sm:%s217] %v226
        $region143: #{tpu_custom_call.1} parent=137 // loop_footer
          %s223 = sadd.s32 1, %s219
        $region144: #{tpu_custom_call.1} parent=137 // loop_footer_branch
          %218 = sbr.rel target = $region140
        $region145: #{tpu_custom_call.1} parent=137 // loop_exit
          _
      $region138: #{tpu_custom_call.1} parent=122 // pred_fallthru
        _
    $region123: #{tpu_custom_call.1} parent=1 // pred_fallthru
      _
    // Predicated region
    $region124: #{tpu_custom_call.1} parent=1 // pred_check
      %p193 = pneg %p189
    $region125: #{tpu_custom_call.1} parent=1 // pred_check_branch
      %195 = sbr.rel (%p193) target = $region127
    $region126: #{tpu_custom_call.1} parent=1 // pred_region
      %s196 = sshllo.u32 0, 1
      loop: start=0, step=1, limit=1
      $region128: #{tpu_custom_call.1} parent=126 // loop_pre_header
        _
      $region129: #{tpu_custom_call.1} parent=126 // loop_header
        %s198 = sphi 0, %s202
        %p199 = scmp.ge.s32.totalorder %s198, 1
        %s203 = sphi %s185, %s185
        %s204 = sphi %s186, %s186
      $region130: #{tpu_custom_call.1} parent=126 // loop_header_branch
        %201 = sbr.rel (%p199) target = $region134
      $region131: #{tpu_custom_call.1} parent=126 // loop_body
        %v205 = vld [vmem:[%s203] sm:%s196]
        %206 = vst [vmem:[%s204] sm:%s196] %v205
      $region132: #{tpu_custom_call.1} parent=126 // loop_footer
        %s202 = sadd.s32 1, %s198
      $region133: #{tpu_custom_call.1} parent=126 // loop_footer_branch
        %197 = sbr.rel target = $region129
      $region134: #{tpu_custom_call.1} parent=126 // loop_exit
        _
    $region127: #{tpu_custom_call.1} parent=1 // pred_fallthru
      _
    // Predicated region
    $region146: #{tpu_custom_call.1} parent=1 // pred_check
      _
    $region147: #{tpu_custom_call.1} parent=1 // pred_check_branch
      %230 = sbr.rel (0) target = $region149
    $region148: #{tpu_custom_call.1} parent=1 // pred_region
      %231 = vsyncadd %s187, 16
    $region149: #{tpu_custom_call.1} parent=1 // pred_fallthru
      _
    %s232 = scalar_lea.vmem %s1, %s42
    %s233 = scalar_lea.vmem [#allocation2], 4
    %s234 = scalar_lea.sflag [#allocation4], 4
    %p236 = scmp.lt.u32.totalorder 1, 8
    %p237 = pneg %p236
    // Predicated region
    $region150: #{tpu_custom_call.1} parent=1 // pred_check
      _
    $region151: #{tpu_custom_call.1} parent=1 // pred_check_branch
      %239 = sbr.rel (%p236) target = $region153
    $region152: #{tpu_custom_call.1} parent=1 // pred_region
      %s254 = sand.u32 1, 7
      %p255 = scmp.eq.s32.totalorder %s254, 0
      %p256 = pneg %p255
      // Predicated region
      $region165: #{tpu_custom_call.1} parent=152 // pred_check
        _
      $region166: #{tpu_custom_call.1} parent=152 // pred_check_branch
        %258 = sbr.rel (%p255) target = $region168
      $region167: #{tpu_custom_call.1} parent=152 // pred_region
        %s259 = sand.u32 1, 7
        %s260 = ssub.s32 1, %s259
        %s261 = scalar_lea.vmem %s232, %s260
        %s262 = ssub.s32 1, %s259
        %s263 = scalar_lea.vmem %s233, %s262 [#allocation2]
        %s264 = sshllo.u32 0, %s259
        loop: start=0, step=1, limit=1
        $region169: #{tpu_custom_call.1} parent=167 // loop_pre_header
          _
        $region170: #{tpu_custom_call.1} parent=167 // loop_header
          %s266 = sphi 0, %s270
          %p267 = scmp.ge.s32.totalorder %s266, 1
          %s271 = sphi %s261, %s261
          %s272 = sphi %s263, %s263
        $region171: #{tpu_custom_call.1} parent=167 // loop_header_branch
          %269 = sbr.rel (%p267) target = $region175
        $region172: #{tpu_custom_call.1} parent=167 // loop_body
          %v273 = vld [vmem:[%s271] sm:%s264]
          %274 = vst [vmem:[%s272] sm:%s264] %v273
        $region173: #{tpu_custom_call.1} parent=167 // loop_footer
          %s270 = sadd.s32 1, %s266
        $region174: #{tpu_custom_call.1} parent=167 // loop_footer_branch
          %265 = sbr.rel target = $region170
        $region175: #{tpu_custom_call.1} parent=167 // loop_exit
          _
      $region168: #{tpu_custom_call.1} parent=152 // pred_fallthru
        _
    $region153: #{tpu_custom_call.1} parent=1 // pred_fallthru
      _
    // Predicated region
    $region154: #{tpu_custom_call.1} parent=1 // pred_check
      %p240 = pneg %p236
    $region155: #{tpu_custom_call.1} parent=1 // pred_check_branch
      %242 = sbr.rel (%p240) target = $region157
    $region156: #{tpu_custom_call.1} parent=1 // pred_region
      %s243 = sshllo.u32 0, 1
      loop: start=0, step=1, limit=1
      $region158: #{tpu_custom_call.1} parent=156 // loop_pre_header
        _
      $region159: #{tpu_custom_call.1} parent=156 // loop_header
        %s245 = sphi 0, %s249
        %p246 = scmp.ge.s32.totalorder %s245, 1
        %s250 = sphi %s232, %s232
        %s251 = sphi %s233, %s233
      $region160: #{tpu_custom_call.1} parent=156 // loop_header_branch
        %248 = sbr.rel (%p246) target = $region164
      $region161: #{tpu_custom_call.1} parent=156 // loop_body
        %v252 = vld [vmem:[%s250] sm:%s243]
        %253 = vst [vmem:[%s251] sm:%s243] %v252
      $region162: #{tpu_custom_call.1} parent=156 // loop_footer
        %s249 = sadd.s32 1, %s245
      $region163: #{tpu_custom_call.1} parent=156 // loop_footer_branch
        %244 = sbr.rel target = $region159
      $region164: #{tpu_custom_call.1} parent=156 // loop_exit
        _
    $region157: #{tpu_custom_call.1} parent=1 // pred_fallthru
      _
    // Predicated region
    $region176: #{tpu_custom_call.1} parent=1 // pred_check
      _
    $region177: #{tpu_custom_call.1} parent=1 // pred_check_branch
      %277 = sbr.rel (0) target = $region179
    $region178: #{tpu_custom_call.1} parent=1 // pred_region
      %278 = vsyncadd %s234, 16
    $region179: #{tpu_custom_call.1} parent=1 // pred_fallthru
      _
    %s279 = scalar_lea.vmem %s1, %s43
    %s280 = scalar_lea.vmem [#allocation2], 5
    %s281 = scalar_lea.sflag [#allocation4], 5
    %p283 = scmp.lt.u32.totalorder 1, 8
    %p284 = pneg %p283
    // Predicated region
    $region180: #{tpu_custom_call.1} parent=1 // pred_check
      _
    $region181: #{tpu_custom_call.1} parent=1 // pred_check_branch
      %286 = sbr.rel (%p283) target = $region183
    $region182: #{tpu_custom_call.1} parent=1 // pred_region
      %s301 = sand.u32 1, 7
      %p302 = scmp.eq.s32.totalorder %s301, 0
      %p303 = pneg %p302
      // Predicated region
      $region195: #{tpu_custom_call.1} parent=182 // pred_check
        _
      $region196: #{tpu_custom_call.1} parent=182 // pred_check_branch
        %305 = sbr.rel (%p302) target = $region198
      $region197: #{tpu_custom_call.1} parent=182 // pred_region
        %s306 = sand.u32 1, 7
        %s307 = ssub.s32 1, %s306
        %s308 = scalar_lea.vmem %s279, %s307
        %s309 = ssub.s32 1, %s306
        %s310 = scalar_lea.vmem %s280, %s309 [#allocation2]
        %s311 = sshllo.u32 0, %s306
        loop: start=0, step=1, limit=1
        $region199: #{tpu_custom_call.1} parent=197 // loop_pre_header
          _
        $region200: #{tpu_custom_call.1} parent=197 // loop_header
          %s313 = sphi 0, %s317
          %p314 = scmp.ge.s32.totalorder %s313, 1
          %s318 = sphi %s308, %s308
          %s319 = sphi %s310, %s310
        $region201: #{tpu_custom_call.1} parent=197 // loop_header_branch
          %316 = sbr.rel (%p314) target = $region205
        $region202: #{tpu_custom_call.1} parent=197 // loop_body
          %v320 = vld [vmem:[%s318] sm:%s311]
          %321 = vst [vmem:[%s319] sm:%s311] %v320
        $region203: #{tpu_custom_call.1} parent=197 // loop_footer
          %s317 = sadd.s32 1, %s313
        $region204: #{tpu_custom_call.1} parent=197 // loop_footer_branch
          %312 = sbr.rel target = $region200
        $region205: #{tpu_custom_call.1} parent=197 // loop_exit
          _
      $region198: #{tpu_custom_call.1} parent=182 // pred_fallthru
        _
    $region183: #{tpu_custom_call.1} parent=1 // pred_fallthru
      _
    // Predicated region
    $region184: #{tpu_custom_call.1} parent=1 // pred_check
      %p287 = pneg %p283
    $region185: #{tpu_custom_call.1} parent=1 // pred_check_branch
      %289 = sbr.rel (%p287) target = $region187
    $region186: #{tpu_custom_call.1} parent=1 // pred_region
      %s290 = sshllo.u32 0, 1
      loop: start=0, step=1, limit=1
      $region188: #{tpu_custom_call.1} parent=186 // loop_pre_header
        _
      $region189: #{tpu_custom_call.1} parent=186 // loop_header
        %s292 = sphi 0, %s296
        %p293 = scmp.ge.s32.totalorder %s292, 1
        %s297 = sphi %s279, %s279
        %s298 = sphi %s280, %s280
      $region190: #{tpu_custom_call.1} parent=186 // loop_header_branch
        %295 = sbr.rel (%p293) target = $region194
      $region191: #{tpu_custom_call.1} parent=186 // loop_body
        %v299 = vld [vmem:[%s297] sm:%s290]
        %300 = vst [vmem:[%s298] sm:%s290] %v299
      $region192: #{tpu_custom_call.1} parent=186 // loop_footer
        %s296 = sadd.s32 1, %s292
      $region193: #{tpu_custom_call.1} parent=186 // loop_footer_branch
        %291 = sbr.rel target = $region189
      $region194: #{tpu_custom_call.1} parent=186 // loop_exit
        _
    $region187: #{tpu_custom_call.1} parent=1 // pred_fallthru
      _
    // Predicated region
    $region206: #{tpu_custom_call.1} parent=1 // pred_check
      _
    $region207: #{tpu_custom_call.1} parent=1 // pred_check_branch
      %324 = sbr.rel (0) target = $region209
    $region208: #{tpu_custom_call.1} parent=1 // pred_region
      %325 = vsyncadd %s281, 16
    $region209: #{tpu_custom_call.1} parent=1 // pred_fallthru
      _
    %s326 = scalar_lea.vmem %s1, %s44
    %s327 = scalar_lea.vmem [#allocation2], 6
    %s328 = scalar_lea.sflag [#allocation4], 6
    %p330 = scmp.lt.u32.totalorder 1, 8
    %p331 = pneg %p330
    // Predicated region
    $region210: #{tpu_custom_call.1} parent=1 // pred_check
      _
    $region211: #{tpu_custom_call.1} parent=1 // pred_check_branch
      %333 = sbr.rel (%p330) target = $region213
    $region212: #{tpu_custom_call.1} parent=1 // pred_region
      %s348 = sand.u32 1, 7
      %p349 = scmp.eq.s32.totalorder %s348, 0
      %p350 = pneg %p349
      // Predicated region
      $region225: #{tpu_custom_call.1} parent=212 // pred_check
        _
      $region226: #{tpu_custom_call.1} parent=212 // pred_check_branch
        %352 = sbr.rel (%p349) target = $region228
      $region227: #{tpu_custom_call.1} parent=212 // pred_region
        %s353 = sand.u32 1, 7
        %s354 = ssub.s32 1, %s353
        %s355 = scalar_lea.vmem %s326, %s354
        %s356 = ssub.s32 1, %s353
        %s357 = scalar_lea.vmem %s327, %s356 [#allocation2]
        %s358 = sshllo.u32 0, %s353
        loop: start=0, step=1, limit=1
        $region229: #{tpu_custom_call.1} parent=227 // loop_pre_header
          _
        $region230: #{tpu_custom_call.1} parent=227 // loop_header
          %s360 = sphi 0, %s364
          %p361 = scmp.ge.s32.totalorder %s360, 1
          %s365 = sphi %s355, %s355
          %s366 = sphi %s357, %s357
        $region231: #{tpu_custom_call.1} parent=227 // loop_header_branch
          %363 = sbr.rel (%p361) target = $region235
        $region232: #{tpu_custom_call.1} parent=227 // loop_body
          %v367 = vld [vmem:[%s365] sm:%s358]
          %368 = vst [vmem:[%s366] sm:%s358] %v367
        $region233: #{tpu_custom_call.1} parent=227 // loop_footer
          %s364 = sadd.s32 1, %s360
        $region234: #{tpu_custom_call.1} parent=227 // loop_footer_branch
          %359 = sbr.rel target = $region230
        $region235: #{tpu_custom_call.1} parent=227 // loop_exit
          _
      $region228: #{tpu_custom_call.1} parent=212 // pred_fallthru
        _
    $region213: #{tpu_custom_call.1} parent=1 // pred_fallthru
      _
    // Predicated region
    $region214: #{tpu_custom_call.1} parent=1 // pred_check
      %p334 = pneg %p330
    $region215: #{tpu_custom_call.1} parent=1 // pred_check_branch
      %336 = sbr.rel (%p334) target = $region217
    $region216: #{tpu_custom_call.1} parent=1 // pred_region
      %s337 = sshllo.u32 0, 1
      loop: start=0, step=1, limit=1
      $region218: #{tpu_custom_call.1} parent=216 // loop_pre_header
        _
      $region219: #{tpu_custom_call.1} parent=216 // loop_header
        %s339 = sphi 0, %s343
        %p340 = scmp.ge.s32.totalorder %s339, 1
        %s344 = sphi %s326, %s326
        %s345 = sphi %s327, %s327
      $region220: #{tpu_custom_call.1} parent=216 // loop_header_branch
        %342 = sbr.rel (%p340) target = $region224
      $region221: #{tpu_custom_call.1} parent=216 // loop_body
        %v346 = vld [vmem:[%s344] sm:%s337]
        %347 = vst [vmem:[%s345] sm:%s337] %v346
      $region222: #{tpu_custom_call.1} parent=216 // loop_footer
        %s343 = sadd.s32 1, %s339
      $region223: #{tpu_custom_call.1} parent=216 // loop_footer_branch
        %338 = sbr.rel target = $region219
      $region224: #{tpu_custom_call.1} parent=216 // loop_exit
        _
    $region217: #{tpu_custom_call.1} parent=1 // pred_fallthru
      _
    // Predicated region
    $region236: #{tpu_custom_call.1} parent=1 // pred_check
      _
    $region237: #{tpu_custom_call.1} parent=1 // pred_check_branch
      %371 = sbr.rel (0) target = $region239
    $region238: #{tpu_custom_call.1} parent=1 // pred_region
      %372 = vsyncadd %s328, 16
    $region239: #{tpu_custom_call.1} parent=1 // pred_fallthru
      _
    %s373 = scalar_lea.vmem %s1, %s45
    %s374 = scalar_lea.vmem [#allocation2], 7
    %s375 = scalar_lea.sflag [#allocation4], 7
    %p377 = scmp.lt.u32.totalorder 1, 8
    %p378 = pneg %p377
    // Predicated region
    $region240: #{tpu_custom_call.1} parent=1 // pred_check
      _
    $region241: #{tpu_custom_call.1} parent=1 // pred_check_branch
      %380 = sbr.rel (%p377) target = $region243
    $region242: #{tpu_custom_call.1} parent=1 // pred_region
      %s395 = sand.u32 1, 7
      %p396 = scmp.eq.s32.totalorder %s395, 0
      %p397 = pneg %p396
      // Predicated region
      $region255: #{tpu_custom_call.1} parent=242 // pred_check
        _
      $region256: #{tpu_custom_call.1} parent=242 // pred_check_branch
        %399 = sbr.rel (%p396) target = $region258
      $region257: #{tpu_custom_call.1} parent=242 // pred_region
        %s400 = sand.u32 1, 7
        %s401 = ssub.s32 1, %s400
        %s402 = scalar_lea.vmem %s373, %s401
        %s403 = ssub.s32 1, %s400
        %s404 = scalar_lea.vmem %s374, %s403 [#allocation2]
        %s405 = sshllo.u32 0, %s400
        loop: start=0, step=1, limit=1
        $region259: #{tpu_custom_call.1} parent=257 // loop_pre_header
          _
        $region260: #{tpu_custom_call.1} parent=257 // loop_header
          %s407 = sphi 0, %s411
          %p408 = scmp.ge.s32.totalorder %s407, 1
          %s412 = sphi %s402, %s402
          %s413 = sphi %s404, %s404
        $region261: #{tpu_custom_call.1} parent=257 // loop_header_branch
          %410 = sbr.rel (%p408) target = $region265
        $region262: #{tpu_custom_call.1} parent=257 // loop_body
          %v414 = vld [vmem:[%s412] sm:%s405]
          %415 = vst [vmem:[%s413] sm:%s405] %v414
        $region263: #{tpu_custom_call.1} parent=257 // loop_footer
          %s411 = sadd.s32 1, %s407
        $region264: #{tpu_custom_call.1} parent=257 // loop_footer_branch
          %406 = sbr.rel target = $region260
        $region265: #{tpu_custom_call.1} parent=257 // loop_exit
          _
      $region258: #{tpu_custom_call.1} parent=242 // pred_fallthru
        _
    $region243: #{tpu_custom_call.1} parent=1 // pred_fallthru
      _
    // Predicated region
    $region244: #{tpu_custom_call.1} parent=1 // pred_check
      %p381 = pneg %p377
    $region245: #{tpu_custom_call.1} parent=1 // pred_check_branch
      %383 = sbr.rel (%p381) target = $region247
    $region246: #{tpu_custom_call.1} parent=1 // pred_region
      %s384 = sshllo.u32 0, 1
      loop: start=0, step=1, limit=1
      $region248: #{tpu_custom_call.1} parent=246 // loop_pre_header
        _
      $region249: #{tpu_custom_call.1} parent=246 // loop_header
        %s386 = sphi 0, %s390
        %p387 = scmp.ge.s32.totalorder %s386, 1
        %s391 = sphi %s373, %s373
        %s392 = sphi %s374, %s374
      $region250: #{tpu_custom_call.1} parent=246 // loop_header_branch
        %389 = sbr.rel (%p387) target = $region254
      $region251: #{tpu_custom_call.1} parent=246 // loop_body
        %v393 = vld [vmem:[%s391] sm:%s384]
        %394 = vst [vmem:[%s392] sm:%s384] %v393
      $region252: #{tpu_custom_call.1} parent=246 // loop_footer
        %s390 = sadd.s32 1, %s386
      $region253: #{tpu_custom_call.1} parent=246 // loop_footer_branch
        %385 = sbr.rel target = $region249
      $region254: #{tpu_custom_call.1} parent=246 // loop_exit
        _
    $region247: #{tpu_custom_call.1} parent=1 // pred_fallthru
      _
    // Predicated region
    $region266: #{tpu_custom_call.1} parent=1 // pred_check
      _
    $region267: #{tpu_custom_call.1} parent=1 // pred_check_branch
      %418 = sbr.rel (0) target = $region269
    $region268: #{tpu_custom_call.1} parent=1 // pred_region
      %419 = vsyncadd %s375, 16
    $region269: #{tpu_custom_call.1} parent=1 // pred_fallthru
      _
    %s420 = smul.u32 1, 1
    %s421 = sshll.u32 %s420, 4
    %422 = dma.done [#allocation4], %s421
    %s423 = sshll.u32 %s420, 4
    %424 = dma.done %s93, %s423
    %s425 = sshll.u32 %s420, 4
    %426 = dma.done %s140, %s425
    %s427 = sshll.u32 %s420, 4
    %428 = dma.done %s187, %s427
    %s429 = sshll.u32 %s420, 4
    %430 = dma.done %s234, %s429
    %s431 = sshll.u32 %s420, 4
    %432 = dma.done %s281, %s431
    %s433 = sshll.u32 %s420, 4
    %434 = dma.done %s328, %s433
    %s435 = sshll.u32 %s420, 4
    %436 = dma.done %s375, %s435
    %v437 = vld [vmem:[#allocation2] sm:$0xff]
    %v438 = vld [vmem:[%s2] sm:$0xff]
    %v439 = vld [vmem:[%s2 + $0x8] sm:$0xff]
    %v440 = vld [vmem:[%s2 + $0x10] sm:$0xff]
    %v441 = vld [vmem:[%s2 + $0x18] sm:$0xff]
    %v442 = vld [vmem:[%s4] sm:$0x1]
    %v444 = vlaneseq
    %v445 = vshrl.u32 %v444, 7
    %v446 = vsub.s32 0, %v445
    %v447 = vrot.slane %v442, %v446
    %vm449 = vcmask 261120
    %v451 = vsel %vm449, %v437, 0
    %453 = vmatprep.subr.mxu0 0.0
    %454 = vmatpush1.msra.mxu0 %v438
    %455 = vmatprep.subr.mxu0 0.0
    %456 = vmatpush1.msra.mxu0 %v439
    %457 = vmatprep.subr.mxu0 0.0
    %458 = vmatpush1.msra.mxu0 %v440
    %459 = vmatprep.subr.mxu0 0.0
    %460 = vmatpush1.msra.mxu0 %v441
    %461 = vmatprep.subr.mxu0 0.0
    %462 = vmatpush1.msra.mxu0 0.0
    %463 = vmatprep.subr.mxu0 0.0
    %464 = vmatpush1.msra.mxu0 0.0
    %465 = vmatprep.subr.mxu0 0.0
    %466 = vmatpush1.msra.mxu0 0.0
    %467 = vmatprep.subr.mxu0 0.0
    %468 = vmatpush1.msra.mxu0 0.0
    %469 = vmatprep.subr.mxu0 0.0
    %470 = vmatpush1.msra.mxu0 0.0
    %471 = vmatprep.subr.mxu0 0.0
    %472 = vmatpush1.msra.mxu0 0.0
    %473 = vmatprep.subr.mxu0 0.0
    %474 = vmatpush1.msra.mxu0 0.0
    %475 = vmatprep.subr.mxu0 0.0
    %476 = vmatpush1.msra.mxu0 0.0
    %477 = vmatprep.subr.mxu0 0.0
    %478 = vmatpush1.msra.mxu0 0.0
    %479 = vmatprep.subr.mxu0 0.0
    %480 = vmatpush1.msra.mxu0 0.0
    %481 = vmatprep.subr.mxu0 0.0
    %482 = vmatpush1.msra.mxu0 0.0
    %483 = vmatprep.subr.mxu0 0.0
    %484 = vmatpush1.msra.mxu0 0.0
    %485 = vmatprep.subr.mxu0 0.0
    %486 = vmatpush1.msra.mxu0 0.0
    %487 = vmatprep.subr.mxu0 0.0
    %488 = vmatpush1.msra.mxu0 0.0
    %489 = vmatprep.subr.mxu0 0.0
    %490 = vmatpush1.msra.mxu0 0.0
    %491 = vmatprep.subr.mxu0 0.0
    %492 = vmatpush1.msra.mxu0 0.0
    %493 = vmatprep.subr.mxu0 0.0
    %494 = vmatpush1.msra.mxu0 0.0
    %495 = vmatprep.subr.mxu0 0.0
    %496 = vmatpush1.msra.mxu0 0.0
    %497 = vmatprep.subr.mxu0 0.0
    %498 = vmatpush1.msra.mxu0 0.0
    %499 = vmatprep.subr.mxu0 0.0
    %500 = vmatpush1.msra.mxu0 0.0
    %501 = vmatprep.subr.mxu0 0.0
    %502 = vmatpush1.msra.mxu0 0.0
    %503 = vmatprep.subr.mxu0 0.0
    %504 = vmatpush1.msra.mxu0 0.0
    %505 = vmatprep.subr.mxu0 0.0
    %506 = vmatpush1.msra.mxu0 0.0
    %507 = vmatprep.subr.mxu0 0.0
    %508 = vmatpush1.msra.mxu0 0.0
    %509 = vmatprep.subr.mxu0 0.0
    %510 = vmatpush1.msra.mxu0 0.0
    %511 = vmatprep.subr.mxu0 0.0
    %512 = vmatpush1.msra.mxu0 0.0
    %513 = vmatprep.subr.mxu0 0.0
    %514 = vmatpush1.msra.mxu0 0.0
    %515 = vmatprep.subr.mxu0 0.0
    %516 = vmatpush1.msra.mxu0 0.0
    %517 = vmatprep.mubr.f32.mxu0 0.0
    %518 = vmatmul.mubr.f32.gmra.mrb[0].mxu0 %v451
    %v519 = vpop.f32.mrb[0].mxu0
    %v520 = vadd.f32 %v447, %v519
    %v521 = vpop.f32.mrb[0].mxu0
    %522 = vdwg.mxu0
    %v523 = vld [vmem:[%s3] sm:$0xff]
    %v524 = vld [vmem:[%s3 + $0x8] sm:$0xff]
    %v525 = vld [vmem:[%s3 + $0x10] sm:$0xff]
    %v526 = vld [vmem:[%s3 + $0x18] sm:$0xff]
    %v528 = vsel %vm449, 0.0, 0
    %530 = vmatprep.subr.mxu0 0.0
    %531 = vmatpush1.msra.mxu0 %v523
    %532 = vmatprep.subr.mxu0 0.0
    %533 = vmatpush1.msra.mxu0 %v524
    %534 = vmatprep.subr.mxu0 0.0
    %535 = vmatpush1.msra.mxu0 %v525
    %536 = vmatprep.subr.mxu0 0.0
    %537 = vmatpush1.msra.mxu0 %v526
    %538 = vmatprep.subr.mxu0 0.0
    %539 = vmatpush1.msra.mxu0 0.0
    %540 = vmatprep.subr.mxu0 0.0
    %541 = vmatpush1.msra.mxu0 0.0
    %542 = vmatprep.subr.mxu0 0.0
    %543 = vmatpush1.msra.mxu0 0.0
    %544 = vmatprep.subr.mxu0 0.0
    %545 = vmatpush1.msra.mxu0 0.0
    %546 = vmatprep.subr.mxu0 0.0
    %547 = vmatpush1.msra.mxu0 0.0
    %548 = vmatprep.subr.mxu0 0.0
    %549 = vmatpush1.msra.mxu0 0.0
    %550 = vmatprep.subr.mxu0 0.0
    %551 = vmatpush1.msra.mxu0 0.0
    %552 = vmatprep.subr.mxu0 0.0
    %553 = vmatpush1.msra.mxu0 0.0
    %554 = vmatprep.subr.mxu0 0.0
    %555 = vmatpush1.msra.mxu0 0.0
    %556 = vmatprep.subr.mxu0 0.0
    %557 = vmatpush1.msra.mxu0 0.0
    %558 = vmatprep.subr.mxu0 0.0
    %559 = vmatpush1.msra.mxu0 0.0
    %560 = vmatprep.subr.mxu0 0.0
    %561 = vmatpush1.msra.mxu0 0.0
    %562 = vmatprep.subr.mxu0 0.0
    %563 = vmatpush1.msra.mxu0 0.0
    %564 = vmatprep.subr.mxu0 0.0
    %565 = vmatpush1.msra.mxu0 0.0
    %566 = vmatprep.subr.mxu0 0.0
    %567 = vmatpush1.msra.mxu0 0.0
    %568 = vmatprep.subr.mxu0 0.0
    %569 = vmatpush1.msra.mxu0 0.0
    %570 = vmatprep.subr.mxu0 0.0
    %571 = vmatpush1.msra.mxu0 0.0
    %572 = vmatprep.subr.mxu0 0.0
    %573 = vmatpush1.msra.mxu0 0.0
    %574 = vmatprep.subr.mxu0 0.0
    %575 = vmatpush1.msra.mxu0 0.0
    %576 = vmatprep.subr.mxu0 0.0
    %577 = vmatpush1.msra.mxu0 0.0
    %578 = vmatprep.subr.mxu0 0.0
    %579 = vmatpush1.msra.mxu0 0.0
    %580 = vmatprep.subr.mxu0 0.0
    %581 = vmatpush1.msra.mxu0 0.0
    %582 = vmatprep.subr.mxu0 0.0
    %583 = vmatpush1.msra.mxu0 0.0
    %584 = vmatprep.subr.mxu0 0.0
    %585 = vmatpush1.msra.mxu0 0.0
    %586 = vmatprep.subr.mxu0 0.0
    %587 = vmatpush1.msra.mxu0 0.0
    %588 = vmatprep.subr.mxu0 0.0
    %589 = vmatpush1.msra.mxu0 0.0
    %590 = vmatprep.subr.mxu0 0.0
    %591 = vmatpush1.msra.mxu0 0.0
    %592 = vmatprep.subr.mxu0 0.0
    %593 = vmatpush1.msra.mxu0 0.0
    %594 = vmatprep.mubr.f32.mxu0 0.0
    %595 = vmatmul.mubr.f32.gmra.mrb[0].mxu0 %v528
    %v596 = vpop.f32.mrb[0].mxu0
    %v597 = vadd.f32 0.0, %v596
    %v598 = vpop.f32.mrb[0].mxu0
    %599 = vdwg.mxu0
    %v600 = vadd.f32 %v520, %v597
    %v601 = vxor.u32 %v600, 2147483648
    %v602 = vmul.f32 %v601, 1.442695
    %v603 = vpow.pop %v602
    %v604 = vadd.f32 %v603, 1.0
    %v605 = vrcp.pop %v604
    %v606 = vmul.f32 1.0, %v605
    %v607 = vtanh.pop %v600
    %v608 = vmul.f32 %v606, 0.0
    %610 = vrot.lane.b32.xlu0 %v607, 64
    %v611 = vpop.permute.xlu0 %610
    %v613 = vmul.f32 %v606, %v611
    %615 = vrot.lane.b32.xlu0 %v613, 32
    %v616 = vpop.permute.xlu0 %615
    %v618 = vadd.f32 %v608, %v616
    %v619 = vtanh.pop %v618
    %621 = vrot.lane.b32.xlu0 %v619, 64
    %v622 = vpop.permute.xlu0 %621
    %v624 = vmul.f32 %v606, %v622
    %626 = vrot.lane.b32.xlu0 %v624, 32
    %v627 = vpop.permute.xlu0 %626
    %vm629 = vcmask 253952
    %630 = vst.msk [vmem:[#allocation3] sm:$0x1] %vm629, %v627
    %v631 = vsel %vm449, %v627, 0
    %633 = vmatprep.subr.mxu0 0.0
    %634 = vmatpush1.msra.mxu0 %v523
    %635 = vmatprep.subr.mxu0 0.0
    %636 = vmatpush1.msra.mxu0 %v524
    %637 = vmatprep.subr.mxu0 0.0
    %638 = vmatpush1.msra.mxu0 %v525
    %639 = vmatprep.subr.mxu0 0.0
    %640 = vmatpush1.msra.mxu0 %v526
    %641 = vmatprep.subr.mxu0 0.0
    %642 = vmatpush1.msra.mxu0 0.0
    %643 = vmatprep.subr.mxu0 0.0
    %644 = vmatpush1.msra.mxu0 0.0
    %645 = vmatprep.subr.mxu0 0.0
    %646 = vmatpush1.msra.mxu0 0.0
    %647 = vmatprep.subr.mxu0 0.0
    %648 = vmatpush1.msra.mxu0 0.0
    %649 = vmatprep.subr.mxu0 0.0
    %650 = vmatpush1.msra.mxu0 0.0
    %651 = vmatprep.subr.mxu0 0.0
    %652 = vmatpush1.msra.mxu0 0.0
    %653 = vmatprep.subr.mxu0 0.0
    %654 = vmatpush1.msra.mxu0 0.0
    %655 = vmatprep.subr.mxu0 0.0
    %656 = vmatpush1.msra.mxu0 0.0
    %657 = vmatprep.subr.mxu0 0.0
    %658 = vmatpush1.msra.mxu0 0.0
    %659 = vmatprep.subr.mxu0 0.0
    %660 = vmatpush1.msra.mxu0 0.0
    %661 = vmatprep.subr.mxu0 0.0
    %662 = vmatpush1.msra.mxu0 0.0
    %663 = vmatprep.subr.mxu0 0.0
    %664 = vmatpush1.msra.mxu0 0.0
    %665 = vmatprep.subr.mxu0 0.0
    %666 = vmatpush1.msra.mxu0 0.0
    %667 = vmatprep.subr.mxu0 0.0
    %668 = vmatpush1.msra.mxu0 0.0
    %669 = vmatprep.subr.mxu0 0.0
    %670 = vmatpush1.msra.mxu0 0.0
    %671 = vmatprep.subr.mxu0 0.0
    %672 = vmatpush1.msra.mxu0 0.0
    %673 = vmatprep.subr.mxu0 0.0
    %674 = vmatpush1.msra.mxu0 0.0
    %675 = vmatprep.subr.mxu0 0.0
    %676 = vmatpush1.msra.mxu0 0.0
    %677 = vmatprep.subr.mxu0 0.0
    %678 = vmatpush1.msra.mxu0 0.0
    %679 = vmatprep.subr.mxu0 0.0
    %680 = vmatpush1.msra.mxu0 0.0
    %681 = vmatprep.subr.mxu0 0.0
    %682 = vmatpush1.msra.mxu0 0.0
    %683 = vmatprep.subr.mxu0 0.0
    %684 = vmatpush1.msra.mxu0 0.0
    %685 = vmatprep.subr.mxu0 0.0
    %686 = vmatpush1.msra.mxu0 0.0
    %687 = vmatprep.subr.mxu0 0.0
    %688 = vmatpush1.msra.mxu0 0.0
    %689 = vmatprep.subr.mxu0 0.0
    %690 = vmatpush1.msra.mxu0 0.0
    %691 = vmatprep.subr.mxu0 0.0
    %692 = vmatpush1.msra.mxu0 0.0
    %693 = vmatprep.subr.mxu0 0.0
    %694 = vmatpush1.msra.mxu0 0.0
    %695 = vmatprep.subr.mxu0 0.0
    %696 = vmatpush1.msra.mxu0 0.0
    %697 = vmatprep.mubr.f32.mxu0 0.0
    %698 = vmatmul.mubr.f32.gmra.mrb[0].mxu0 %v631
    %v699 = vpop.f32.mrb[0].mxu0
    %v700 = vadd.f32 0.0, %v699
    %v701 = vpop.f32.mrb[0].mxu0
    %702 = vdwg.mxu0
    %v704 = vrot.slane %v700, 7
    %v706 = vadd.f32 %v520, %v704
    %v707 = vxor.u32 %v706, 2147483648
    %v708 = vmul.f32 %v707, 1.442695
    %v709 = vpow.pop %v708
    %v710 = vadd.f32 %v709, 1.0
    %v711 = vrcp.pop %v710
    %v712 = vmul.f32 1.0, %v711
    %v713 = vtanh.pop %v706
    %v715 = vrot.slane %v618, 7
    %v717 = vmul.f32 %v712, %v715
    %719 = vrot.lane.b32.xlu0 %v713, 64
    %v720 = vpop.permute.xlu0 %719
    %v722 = vmul.f32 %v712, %v720
    %724 = vrot.lane.b32.xlu0 %v722, 32
    %v725 = vpop.permute.xlu0 %724
    %v727 = vadd.f32 %v717, %v725
    %v728 = vtanh.pop %v727
    %730 = vrot.lane.b32.xlu0 %v728, 64
    %v731 = vpop.permute.xlu0 %730
    %v733 = vmul.f32 %v712, %v731
    %735 = vrot.lane.b32.xlu0 %v733, 32
    %v736 = vpop.permute.xlu0 %735
    %vm738 = vcmask 254977
    %739 = vst.msk [vmem:[#allocation3] sm:$0x2] %vm738, %v736
    %v740 = vrot.slane %v733, 1
    %741 = vrot.lane.b32.xlu0 %v740, 32
    %v742 = vpop.permute.xlu0 %741
    %v743 = vsel %vm449, %v742, 0
    %745 = vmatprep.subr.mxu0 0.0
    %746 = vmatpush1.msra.mxu0 %v523
    %747 = vmatprep.subr.mxu0 0.0
    %748 = vmatpush1.msra.mxu0 %v524
    %749 = vmatprep.subr.mxu0 0.0
    %750 = vmatpush1.msra.mxu0 %v525
    %751 = vmatprep.subr.mxu0 0.0
    %752 = vmatpush1.msra.mxu0 %v526
    %753 = vmatprep.subr.mxu0 0.0
    %754 = vmatpush1.msra.mxu0 0.0
    %755 = vmatprep.subr.mxu0 0.0
    %756 = vmatpush1.msra.mxu0 0.0
    %757 = vmatprep.subr.mxu0 0.0
    %758 = vmatpush1.msra.mxu0 0.0
    %759 = vmatprep.subr.mxu0 0.0
    %760 = vmatpush1.msra.mxu0 0.0
    %761 = vmatprep.subr.mxu0 0.0
    %762 = vmatpush1.msra.mxu0 0.0
    %763 = vmatprep.subr.mxu0 0.0
    %764 = vmatpush1.msra.mxu0 0.0
    %765 = vmatprep.subr.mxu0 0.0
    %766 = vmatpush1.msra.mxu0 0.0
    %767 = vmatprep.subr.mxu0 0.0
    %768 = vmatpush1.msra.mxu0 0.0
    %769 = vmatprep.subr.mxu0 0.0
    %770 = vmatpush1.msra.mxu0 0.0
    %771 = vmatprep.subr.mxu0 0.0
    %772 = vmatpush1.msra.mxu0 0.0
    %773 = vmatprep.subr.mxu0 0.0
    %774 = vmatpush1.msra.mxu0 0.0
    %775 = vmatprep.subr.mxu0 0.0
    %776 = vmatpush1.msra.mxu0 0.0
    %777 = vmatprep.subr.mxu0 0.0
    %778 = vmatpush1.msra.mxu0 0.0
    %779 = vmatprep.subr.mxu0 0.0
    %780 = vmatpush1.msra.mxu0 0.0
    %781 = vmatprep.subr.mxu0 0.0
    %782 = vmatpush1.msra.mxu0 0.0
    %783 = vmatprep.subr.mxu0 0.0
    %784 = vmatpush1.msra.mxu0 0.0
    %785 = vmatprep.subr.mxu0 0.0
    %786 = vmatpush1.msra.mxu0 0.0
    %787 = vmatprep.subr.mxu0 0.0
    %788 = vmatpush1.msra.mxu0 0.0
    %789 = vmatprep.subr.mxu0 0.0
    %790 = vmatpush1.msra.mxu0 0.0
    %791 = vmatprep.subr.mxu0 0.0
    %792 = vmatpush1.msra.mxu0 0.0
    %793 = vmatprep.subr.mxu0 0.0
    %794 = vmatpush1.msra.mxu0 0.0
    %795 = vmatprep.subr.mxu0 0.0
    %796 = vmatpush1.msra.mxu0 0.0
    %797 = vmatprep.subr.mxu0 0.0
    %798 = vmatpush1.msra.mxu0 0.0
    %799 = vmatprep.subr.mxu0 0.0
    %800 = vmatpush1.msra.mxu0 0.0
    %801 = vmatprep.subr.mxu0 0.0
    %802 = vmatpush1.msra.mxu0 0.0
    %803 = vmatprep.subr.mxu0 0.0
    %804 = vmatpush1.msra.mxu0 0.0
    %805 = vmatprep.subr.mxu0 0.0
    %806 = vmatpush1.msra.mxu0 0.0
    %807 = vmatprep.subr.mxu0 0.0
    %808 = vmatpush1.msra.mxu0 0.0
    %809 = vmatprep.mubr.f32.mxu0 0.0
    %810 = vmatmul.mubr.f32.gmra.mrb[0].mxu0 %v743
    %v811 = vpop.f32.mrb[0].mxu0
    %v812 = vadd.f32 0.0, %v811
    %v813 = vpop.f32.mrb[0].mxu0
    %814 = vdwg.mxu0
    %v816 = vrot.slane %v812, 6
    %v818 = vadd.f32 %v520, %v816
    %v819 = vxor.u32 %v818, 2147483648
    %v820 = vmul.f32 %v819, 1.442695
    %v821 = vpow.pop %v820
    %v822 = vadd.f32 %v821, 1.0
    %v823 = vrcp.pop %v822
    %v824 = vmul.f32 1.0, %v823
    %v825 = vtanh.pop %v818
    %v827 = vrot.slane %v727, 7
    %v829 = vmul.f32 %v824, %v827
    %831 = vrot.lane.b32.xlu0 %v825, 64
    %v832 = vpop.permute.xlu0 %831
    %v834 = vmul.f32 %v824, %v832
    %836 = vrot.lane.b32.xlu0 %v834, 32
    %v837 = vpop.permute.xlu0 %836
    %v839 = vadd.f32 %v829, %v837
    %v840 = vtanh.pop %v839
    %842 = vrot.lane.b32.xlu0 %v840, 64
    %v843 = vpop.permute.xlu0 %842
    %v845 = vmul.f32 %v824, %v843
    %847 = vrot.lane.b32.xlu0 %v845, 32
    %v848 = vpop.permute.xlu0 %847
    %vm850 = vcmask 256002
    %851 = vst.msk [vmem:[#allocation3] sm:$0x4] %vm850, %v848
    %v852 = vrot.slane %v845, 2
    %853 = vrot.lane.b32.xlu0 %v852, 32
    %v854 = vpop.permute.xlu0 %853
    %v855 = vsel %vm449, %v854, 0
    %857 = vmatprep.subr.mxu0 0.0
    %858 = vmatpush1.msra.mxu0 %v523
    %859 = vmatprep.subr.mxu0 0.0
    %860 = vmatpush1.msra.mxu0 %v524
    %861 = vmatprep.subr.mxu0 0.0
    %862 = vmatpush1.msra.mxu0 %v525
    %863 = vmatprep.subr.mxu0 0.0
    %864 = vmatpush1.msra.mxu0 %v526
    %865 = vmatprep.subr.mxu0 0.0
    %866 = vmatpush1.msra.mxu0 0.0
    %867 = vmatprep.subr.mxu0 0.0
    %868 = vmatpush1.msra.mxu0 0.0
    %869 = vmatprep.subr.mxu0 0.0
    %870 = vmatpush1.msra.mxu0 0.0
    %871 = vmatprep.subr.mxu0 0.0
    %872 = vmatpush1.msra.mxu0 0.0
    %873 = vmatprep.subr.mxu0 0.0
    %874 = vmatpush1.msra.mxu0 0.0
    %875 = vmatprep.subr.mxu0 0.0
    %876 = vmatpush1.msra.mxu0 0.0
    %877 = vmatprep.subr.mxu0 0.0
    %878 = vmatpush1.msra.mxu0 0.0
    %879 = vmatprep.subr.mxu0 0.0
    %880 = vmatpush1.msra.mxu0 0.0
    %881 = vmatprep.subr.mxu0 0.0
    %882 = vmatpush1.msra.mxu0 0.0
    %883 = vmatprep.subr.mxu0 0.0
    %884 = vmatpush1.msra.mxu0 0.0
    %885 = vmatprep.subr.mxu0 0.0
    %886 = vmatpush1.msra.mxu0 0.0
    %887 = vmatprep.subr.mxu0 0.0
    %888 = vmatpush1.msra.mxu0 0.0
    %889 = vmatprep.subr.mxu0 0.0
    %890 = vmatpush1.msra.mxu0 0.0
    %891 = vmatprep.subr.mxu0 0.0
    %892 = vmatpush1.msra.mxu0 0.0
    %893 = vmatprep.subr.mxu0 0.0
    %894 = vmatpush1.msra.mxu0 0.0
    %895 = vmatprep.subr.mxu0 0.0
    %896 = vmatpush1.msra.mxu0 0.0
    %897 = vmatprep.subr.mxu0 0.0
    %898 = vmatpush1.msra.mxu0 0.0
    %899 = vmatprep.subr.mxu0 0.0
    %900 = vmatpush1.msra.mxu0 0.0
    %901 = vmatprep.subr.mxu0 0.0
    %902 = vmatpush1.msra.mxu0 0.0
    %903 = vmatprep.subr.mxu0 0.0
    %904 = vmatpush1.msra.mxu0 0.0
    %905 = vmatprep.subr.mxu0 0.0
    %906 = vmatpush1.msra.mxu0 0.0
    %907 = vmatprep.subr.mxu0 0.0
    %908 = vmatpush1.msra.mxu0 0.0
    %909 = vmatprep.subr.mxu0 0.0
    %910 = vmatpush1.msra.mxu0 0.0
    %911 = vmatprep.subr.mxu0 0.0
    %912 = vmatpush1.msra.mxu0 0.0
    %913 = vmatprep.subr.mxu0 0.0
    %914 = vmatpush1.msra.mxu0 0.0
    %915 = vmatprep.subr.mxu0 0.0
    %916 = vmatpush1.msra.mxu0 0.0
    %917 = vmatprep.subr.mxu0 0.0
    %918 = vmatpush1.msra.mxu0 0.0
    %919 = vmatprep.subr.mxu0 0.0
    %920 = vmatpush1.msra.mxu0 0.0
    %921 = vmatprep.mubr.f32.mxu0 0.0
    %922 = vmatmul.mubr.f32.gmra.mrb[0].mxu0 %v855
    %v923 = vpop.f32.mrb[0].mxu0
    %v924 = vadd.f32 0.0, %v923
    %v925 = vpop.f32.mrb[0].mxu0
    %926 = vdwg.mxu0
    %v928 = vrot.slane %v924, 5
    %v930 = vadd.f32 %v520, %v928
    %v931 = vxor.u32 %v930, 2147483648
    %v932 = vmul.f32 %v931, 1.442695
    %v933 = vpow.pop %v932
    %v934 = vadd.f32 %v933, 1.0
    %v935 = vrcp.pop %v934
    %v936 = vmul.f32 1.0, %v935
    %v937 = vtanh.pop %v930
    %v939 = vrot.slane %v839, 7
    %v941 = vmul.f32 %v936, %v939
    %943 = vrot.lane.b32.xlu0 %v937, 64
    %v944 = vpop.permute.xlu0 %943
    %v946 = vmul.f32 %v936, %v944
    %948 = vrot.lane.b32.xlu0 %v946, 32
    %v949 = vpop.permute.xlu0 %948
    %v951 = vadd.f32 %v941, %v949
    %v952 = vtanh.pop %v951
    %954 = vrot.lane.b32.xlu0 %v952, 64
    %v955 = vpop.permute.xlu0 %954
    %v957 = vmul.f32 %v936, %v955
    %959 = vrot.lane.b32.xlu0 %v957, 32
    %v960 = vpop.permute.xlu0 %959
    %vm962 = vcmask 257027
    %963 = vst.msk [vmem:[#allocation3] sm:$0x8] %vm962, %v960
    %v964 = vrot.slane %v957, 3
    %965 = vrot.lane.b32.xlu0 %v964, 32
    %v966 = vpop.permute.xlu0 %965
    %v967 = vsel %vm449, %v966, 0
    %969 = vmatprep.subr.mxu0 0.0
    %970 = vmatpush1.msra.mxu0 %v523
    %971 = vmatprep.subr.mxu0 0.0
    %972 = vmatpush1.msra.mxu0 %v524
    %973 = vmatprep.subr.mxu0 0.0
    %974 = vmatpush1.msra.mxu0 %v525
    %975 = vmatprep.subr.mxu0 0.0
    %976 = vmatpush1.msra.mxu0 %v526
    %977 = vmatprep.subr.mxu0 0.0
    %978 = vmatpush1.msra.mxu0 0.0
    %979 = vmatprep.subr.mxu0 0.0
    %980 = vmatpush1.msra.mxu0 0.0
    %981 = vmatprep.subr.mxu0 0.0
    %982 = vmatpush1.msra.mxu0 0.0
    %983 = vmatprep.subr.mxu0 0.0
    %984 = vmatpush1.msra.mxu0 0.0
    %985 = vmatprep.subr.mxu0 0.0
    %986 = vmatpush1.msra.mxu0 0.0
    %987 = vmatprep.subr.mxu0 0.0
    %988 = vmatpush1.msra.mxu0 0.0
    %989 = vmatprep.subr.mxu0 0.0
    %990 = vmatpush1.msra.mxu0 0.0
    %991 = vmatprep.subr.mxu0 0.0
    %992 = vmatpush1.msra.mxu0 0.0
    %993 = vmatprep.subr.mxu0 0.0
    %994 = vmatpush1.msra.mxu0 0.0
    %995 = vmatprep.subr.mxu0 0.0
    %996 = vmatpush1.msra.mxu0 0.0
    %997 = vmatprep.subr.mxu0 0.0
    %998 = vmatpush1.msra.mxu0 0.0
    %999 = vmatprep.subr.mxu0 0.0
    %1000 = vmatpush1.msra.mxu0 0.0
    %1001 = vmatprep.subr.mxu0 0.0
    %1002 = vmatpush1.msra.mxu0 0.0
    %1003 = vmatprep.subr.mxu0 0.0
    %1004 = vmatpush1.msra.mxu0 0.0
    %1005 = vmatprep.subr.mxu0 0.0
    %1006 = vmatpush1.msra.mxu0 0.0
    %1007 = vmatprep.subr.mxu0 0.0
    %1008 = vmatpush1.msra.mxu0 0.0
    %1009 = vmatprep.subr.mxu0 0.0
    %1010 = vmatpush1.msra.mxu0 0.0
    %1011 = vmatprep.subr.mxu0 0.0
    %1012 = vmatpush1.msra.mxu0 0.0
    %1013 = vmatprep.subr.mxu0 0.0
    %1014 = vmatpush1.msra.mxu0 0.0
    %1015 = vmatprep.subr.mxu0 0.0
    %1016 = vmatpush1.msra.mxu0 0.0
    %1017 = vmatprep.subr.mxu0 0.0
    %1018 = vmatpush1.msra.mxu0 0.0
    %1019 = vmatprep.subr.mxu0 0.0
    %1020 = vmatpush1.msra.mxu0 0.0
    %1021 = vmatprep.subr.mxu0 0.0
    %1022 = vmatpush1.msra.mxu0 0.0
    %1023 = vmatprep.subr.mxu0 0.0
    %1024 = vmatpush1.msra.mxu0 0.0
    %1025 = vmatprep.subr.mxu0 0.0
    %1026 = vmatpush1.msra.mxu0 0.0
    %1027 = vmatprep.subr.mxu0 0.0
    %1028 = vmatpush1.msra.mxu0 0.0
    %1029 = vmatprep.subr.mxu0 0.0
    %1030 = vmatpush1.msra.mxu0 0.0
    %1031 = vmatprep.subr.mxu0 0.0
    %1032 = vmatpush1.msra.mxu0 0.0
    %1033 = vmatprep.mubr.f32.mxu0 0.0
    %1034 = vmatmul.mubr.f32.gmra.mrb[0].mxu0 %v967
    %v1035 = vpop.f32.mrb[0].mxu0
    %v1036 = vadd.f32 0.0, %v1035
    %v1037 = vpop.f32.mrb[0].mxu0
    %1038 = vdwg.mxu0
    %v1040 = vrot.slane %v1036, 4
    %v1042 = vadd.f32 %v520, %v1040
    %v1043 = vxor.u32 %v1042, 2147483648
    %v1044 = vmul.f32 %v1043, 1.442695
    %v1045 = vpow.pop %v1044
    %v1046 = vadd.f32 %v1045, 1.0
    %v1047 = vrcp.pop %v1046
    %v1048 = vmul.f32 1.0, %v1047
    %v1049 = vtanh.pop %v1042
    %v1051 = vrot.slane %v951, 7
    %v1053 = vmul.f32 %v1048, %v1051
    %1055 = vrot.lane.b32.xlu0 %v1049, 64
    %v1056 = vpop.permute.xlu0 %1055
    %v1058 = vmul.f32 %v1048, %v1056
    %1060 = vrot.lane.b32.xlu0 %v1058, 32
    %v1061 = vpop.permute.xlu0 %1060
    %v1063 = vadd.f32 %v1053, %v1061
    %v1064 = vtanh.pop %v1063
    %1066 = vrot.lane.b32.xlu0 %v1064, 64
    %v1067 = vpop.permute.xlu0 %1066
    %v1069 = vmul.f32 %v1048, %v1067
    %1071 = vrot.lane.b32.xlu0 %v1069, 32
    %v1072 = vpop.permute.xlu0 %1071
    %vm1074 = vcmask 258052
    %1075 = vst.msk [vmem:[#allocation3] sm:$0x10] %vm1074, %v1072
    %v1076 = vrot.slane %v1069, 4
    %1077 = vrot.lane.b32.xlu0 %v1076, 32
    %v1078 = vpop.permute.xlu0 %1077
    %v1079 = vsel %vm449, %v1078, 0
    %1081 = vmatprep.subr.mxu0 0.0
    %1082 = vmatpush1.msra.mxu0 %v523
    %1083 = vmatprep.subr.mxu0 0.0
    %1084 = vmatpush1.msra.mxu0 %v524
    %1085 = vmatprep.subr.mxu0 0.0
    %1086 = vmatpush1.msra.mxu0 %v525
    %1087 = vmatprep.subr.mxu0 0.0
    %1088 = vmatpush1.msra.mxu0 %v526
    %1089 = vmatprep.subr.mxu0 0.0
    %1090 = vmatpush1.msra.mxu0 0.0
    %1091 = vmatprep.subr.mxu0 0.0
    %1092 = vmatpush1.msra.mxu0 0.0
    %1093 = vmatprep.subr.mxu0 0.0
    %1094 = vmatpush1.msra.mxu0 0.0
    %1095 = vmatprep.subr.mxu0 0.0
    %1096 = vmatpush1.msra.mxu0 0.0
    %1097 = vmatprep.subr.mxu0 0.0
    %1098 = vmatpush1.msra.mxu0 0.0
    %1099 = vmatprep.subr.mxu0 0.0
    %1100 = vmatpush1.msra.mxu0 0.0
    %1101 = vmatprep.subr.mxu0 0.0
    %1102 = vmatpush1.msra.mxu0 0.0
    %1103 = vmatprep.subr.mxu0 0.0
    %1104 = vmatpush1.msra.mxu0 0.0
    %1105 = vmatprep.subr.mxu0 0.0
    %1106 = vmatpush1.msra.mxu0 0.0
    %1107 = vmatprep.subr.mxu0 0.0
    %1108 = vmatpush1.msra.mxu0 0.0
    %1109 = vmatprep.subr.mxu0 0.0
    %1110 = vmatpush1.msra.mxu0 0.0
    %1111 = vmatprep.subr.mxu0 0.0
    %1112 = vmatpush1.msra.mxu0 0.0
    %1113 = vmatprep.subr.mxu0 0.0
    %1114 = vmatpush1.msra.mxu0 0.0
    %1115 = vmatprep.subr.mxu0 0.0
    %1116 = vmatpush1.msra.mxu0 0.0
    %1117 = vmatprep.subr.mxu0 0.0
    %1118 = vmatpush1.msra.mxu0 0.0
    %1119 = vmatprep.subr.mxu0 0.0
    %1120 = vmatpush1.msra.mxu0 0.0
    %1121 = vmatprep.subr.mxu0 0.0
    %1122 = vmatpush1.msra.mxu0 0.0
    %1123 = vmatprep.subr.mxu0 0.0
    %1124 = vmatpush1.msra.mxu0 0.0
    %1125 = vmatprep.subr.mxu0 0.0
    %1126 = vmatpush1.msra.mxu0 0.0
    %1127 = vmatprep.subr.mxu0 0.0
    %1128 = vmatpush1.msra.mxu0 0.0
    %1129 = vmatprep.subr.mxu0 0.0
    %1130 = vmatpush1.msra.mxu0 0.0
    %1131 = vmatprep.subr.mxu0 0.0
    %1132 = vmatpush1.msra.mxu0 0.0
    %1133 = vmatprep.subr.mxu0 0.0
    %1134 = vmatpush1.msra.mxu0 0.0
    %1135 = vmatprep.subr.mxu0 0.0
    %1136 = vmatpush1.msra.mxu0 0.0
    %1137 = vmatprep.subr.mxu0 0.0
    %1138 = vmatpush1.msra.mxu0 0.0
    %1139 = vmatprep.subr.mxu0 0.0
    %1140 = vmatpush1.msra.mxu0 0.0
    %1141 = vmatprep.subr.mxu0 0.0
    %1142 = vmatpush1.msra.mxu0 0.0
    %1143 = vmatprep.subr.mxu0 0.0
    %1144 = vmatpush1.msra.mxu0 0.0
    %1145 = vmatprep.mubr.f32.mxu0 0.0
    %1146 = vmatmul.mubr.f32.gmra.mrb[0].mxu0 %v1079
    %v1147 = vpop.f32.mrb[0].mxu0
    %v1148 = vadd.f32 0.0, %v1147
    %v1149 = vpop.f32.mrb[0].mxu0
    %1150 = vdwg.mxu0
    %v1152 = vrot.slane %v1148, 3
    %v1154 = vadd.f32 %v520, %v1152
    %v1155 = vxor.u32 %v1154, 2147483648
    %v1156 = vmul.f32 %v1155, 1.442695
    %v1157 = vpow.pop %v1156
    %v1158 = vadd.f32 %v1157, 1.0
    %v1159 = vrcp.pop %v1158
    %v1160 = vmul.f32 1.0, %v1159
    %v1161 = vtanh.pop %v1154
    %v1163 = vrot.slane %v1063, 7
    %v1165 = vmul.f32 %v1160, %v1163
    %1167 = vrot.lane.b32.xlu0 %v1161, 64
    %v1168 = vpop.permute.xlu0 %1167
    %v1170 = vmul.f32 %v1160, %v1168
    %1172 = vrot.lane.b32.xlu0 %v1170, 32
    %v1173 = vpop.permute.xlu0 %1172
    %v1175 = vadd.f32 %v1165, %v1173
    %v1176 = vtanh.pop %v1175
    %1178 = vrot.lane.b32.xlu0 %v1176, 64
    %v1179 = vpop.permute.xlu0 %1178
    %v1181 = vmul.f32 %v1160, %v1179
    %1183 = vrot.lane.b32.xlu0 %v1181, 32
    %v1184 = vpop.permute.xlu0 %1183
    %vm1186 = vcmask 259077
    %1187 = vst.msk [vmem:[#allocation3] sm:$0x20] %vm1186, %v1184
    %v1188 = vrot.slane %v1181, 5
    %1189 = vrot.lane.b32.xlu0 %v1188, 32
    %v1190 = vpop.permute.xlu0 %1189
    %v1191 = vsel %vm449, %v1190, 0
    %1193 = vmatprep.subr.mxu0 0.0
    %1194 = vmatpush1.msra.mxu0 %v523
    %1195 = vmatprep.subr.mxu0 0.0
    %1196 = vmatpush1.msra.mxu0 %v524
    %1197 = vmatprep.subr.mxu0 0.0
    %1198 = vmatpush1.msra.mxu0 %v525
    %1199 = vmatprep.subr.mxu0 0.0
    %1200 = vmatpush1.msra.mxu0 %v526
    %1201 = vmatprep.subr.mxu0 0.0
    %1202 = vmatpush1.msra.mxu0 0.0
    %1203 = vmatprep.subr.mxu0 0.0
    %1204 = vmatpush1.msra.mxu0 0.0
    %1205 = vmatprep.subr.mxu0 0.0
    %1206 = vmatpush1.msra.mxu0 0.0
    %1207 = vmatprep.subr.mxu0 0.0
    %1208 = vmatpush1.msra.mxu0 0.0
    %1209 = vmatprep.subr.mxu0 0.0
    %1210 = vmatpush1.msra.mxu0 0.0
    %1211 = vmatprep.subr.mxu0 0.0
    %1212 = vmatpush1.msra.mxu0 0.0
    %1213 = vmatprep.subr.mxu0 0.0
    %1214 = vmatpush1.msra.mxu0 0.0
    %1215 = vmatprep.subr.mxu0 0.0
    %1216 = vmatpush1.msra.mxu0 0.0
    %1217 = vmatprep.subr.mxu0 0.0
    %1218 = vmatpush1.msra.mxu0 0.0
    %1219 = vmatprep.subr.mxu0 0.0
    %1220 = vmatpush1.msra.mxu0 0.0
    %1221 = vmatprep.subr.mxu0 0.0
    %1222 = vmatpush1.msra.mxu0 0.0
    %1223 = vmatprep.subr.mxu0 0.0
    %1224 = vmatpush1.msra.mxu0 0.0
    %1225 = vmatprep.subr.mxu0 0.0
    %1226 = vmatpush1.msra.mxu0 0.0
    %1227 = vmatprep.subr.mxu0 0.0
    %1228 = vmatpush1.msra.mxu0 0.0
    %1229 = vmatprep.subr.mxu0 0.0
    %1230 = vmatpush1.msra.mxu0 0.0
    %1231 = vmatprep.subr.mxu0 0.0
    %1232 = vmatpush1.msra.mxu0 0.0
    %1233 = vmatprep.subr.mxu0 0.0
    %1234 = vmatpush1.msra.mxu0 0.0
    %1235 = vmatprep.subr.mxu0 0.0
    %1236 = vmatpush1.msra.mxu0 0.0
    %1237 = vmatprep.subr.mxu0 0.0
    %1238 = vmatpush1.msra.mxu0 0.0
    %1239 = vmatprep.subr.mxu0 0.0
    %1240 = vmatpush1.msra.mxu0 0.0
    %1241 = vmatprep.subr.mxu0 0.0
    %1242 = vmatpush1.msra.mxu0 0.0
    %1243 = vmatprep.subr.mxu0 0.0
    %1244 = vmatpush1.msra.mxu0 0.0
    %1245 = vmatprep.subr.mxu0 0.0
    %1246 = vmatpush1.msra.mxu0 0.0
    %1247 = vmatprep.subr.mxu0 0.0
    %1248 = vmatpush1.msra.mxu0 0.0
    %1249 = vmatprep.subr.mxu0 0.0
    %1250 = vmatpush1.msra.mxu0 0.0
    %1251 = vmatprep.subr.mxu0 0.0
    %1252 = vmatpush1.msra.mxu0 0.0
    %1253 = vmatprep.subr.mxu0 0.0
    %1254 = vmatpush1.msra.mxu0 0.0
    %1255 = vmatprep.subr.mxu0 0.0
    %1256 = vmatpush1.msra.mxu0 0.0
    %1257 = vmatprep.mubr.f32.mxu0 0.0
    %1258 = vmatmul.mubr.f32.gmra.mrb[0].mxu0 %v1191
    %v1259 = vpop.f32.mrb[0].mxu0
    %v1260 = vadd.f32 0.0, %v1259
    %v1261 = vpop.f32.mrb[0].mxu0
    %1262 = vdwg.mxu0
    %v1264 = vrot.slane %v1260, 2
    %v1266 = vadd.f32 %v520, %v1264
    %v1267 = vxor.u32 %v1266, 2147483648
    %v1268 = vmul.f32 %v1267, 1.442695
    %v1269 = vpow.pop %v1268
    %v1270 = vadd.f32 %v1269, 1.0
    %v1271 = vrcp.pop %v1270
    %v1272 = vmul.f32 1.0, %v1271
    %v1273 = vtanh.pop %v1266
    %v1275 = vrot.slane %v1175, 7
    %v1277 = vmul.f32 %v1272, %v1275
    %1279 = vrot.lane.b32.xlu0 %v1273, 64
    %v1280 = vpop.permute.xlu0 %1279
    %v1282 = vmul.f32 %v1272, %v1280
    %1284 = vrot.lane.b32.xlu0 %v1282, 32
    %v1285 = vpop.permute.xlu0 %1284
    %v1287 = vadd.f32 %v1277, %v1285
    %v1288 = vtanh.pop %v1287
    %1290 = vrot.lane.b32.xlu0 %v1288, 64
    %v1291 = vpop.permute.xlu0 %1290
    %v1293 = vmul.f32 %v1272, %v1291
    %1295 = vrot.lane.b32.xlu0 %v1293, 32
    %v1296 = vpop.permute.xlu0 %1295
    %vm1298 = vcmask 260102
    %1299 = vst.msk [vmem:[#allocation3] sm:$0x40] %vm1298, %v1296
    %v1300 = vrot.slane %v1293, 6
    %1301 = vrot.lane.b32.xlu0 %v1300, 32
    %v1302 = vpop.permute.xlu0 %1301
    %v1303 = vsel %vm449, %v1302, 0
    %1305 = vmatprep.subr.mxu0 0.0
    %1306 = vmatpush1.msra.mxu0 %v523
    %1307 = vmatprep.subr.mxu0 0.0
    %1308 = vmatpush1.msra.mxu0 %v524
    %1309 = vmatprep.subr.mxu0 0.0
    %1310 = vmatpush1.msra.mxu0 %v525
    %1311 = vmatprep.subr.mxu0 0.0
    %1312 = vmatpush1.msra.mxu0 %v526
    %1313 = vmatprep.subr.mxu0 0.0
    %1314 = vmatpush1.msra.mxu0 0.0
    %1315 = vmatprep.subr.mxu0 0.0
    %1316 = vmatpush1.msra.mxu0 0.0
    %1317 = vmatprep.subr.mxu0 0.0
    %1318 = vmatpush1.msra.mxu0 0.0
    %1319 = vmatprep.subr.mxu0 0.0
    %1320 = vmatpush1.msra.mxu0 0.0
    %1321 = vmatprep.subr.mxu0 0.0
    %1322 = vmatpush1.msra.mxu0 0.0
    %1323 = vmatprep.subr.mxu0 0.0
    %1324 = vmatpush1.msra.mxu0 0.0
    %1325 = vmatprep.subr.mxu0 0.0
    %1326 = vmatpush1.msra.mxu0 0.0
    %1327 = vmatprep.subr.mxu0 0.0
    %1328 = vmatpush1.msra.mxu0 0.0
    %1329 = vmatprep.subr.mxu0 0.0
    %1330 = vmatpush1.msra.mxu0 0.0
    %1331 = vmatprep.subr.mxu0 0.0
    %1332 = vmatpush1.msra.mxu0 0.0
    %1333 = vmatprep.subr.mxu0 0.0
    %1334 = vmatpush1.msra.mxu0 0.0
    %1335 = vmatprep.subr.mxu0 0.0
    %1336 = vmatpush1.msra.mxu0 0.0
    %1337 = vmatprep.subr.mxu0 0.0
    %1338 = vmatpush1.msra.mxu0 0.0
    %1339 = vmatprep.subr.mxu0 0.0
    %1340 = vmatpush1.msra.mxu0 0.0
    %1341 = vmatprep.subr.mxu0 0.0
    %1342 = vmatpush1.msra.mxu0 0.0
    %1343 = vmatprep.subr.mxu0 0.0
    %1344 = vmatpush1.msra.mxu0 0.0
    %1345 = vmatprep.subr.mxu0 0.0
    %1346 = vmatpush1.msra.mxu0 0.0
    %1347 = vmatprep.subr.mxu0 0.0
    %1348 = vmatpush1.msra.mxu0 0.0
    %1349 = vmatprep.subr.mxu0 0.0
    %1350 = vmatpush1.msra.mxu0 0.0
    %1351 = vmatprep.subr.mxu0 0.0
    %1352 = vmatpush1.msra.mxu0 0.0
    %1353 = vmatprep.subr.mxu0 0.0
    %1354 = vmatpush1.msra.mxu0 0.0
    %1355 = vmatprep.subr.mxu0 0.0
    %1356 = vmatpush1.msra.mxu0 0.0
    %1357 = vmatprep.subr.mxu0 0.0
    %1358 = vmatpush1.msra.mxu0 0.0
    %1359 = vmatprep.subr.mxu0 0.0
    %1360 = vmatpush1.msra.mxu0 0.0
    %1361 = vmatprep.subr.mxu0 0.0
    %1362 = vmatpush1.msra.mxu0 0.0
    %1363 = vmatprep.subr.mxu0 0.0
    %1364 = vmatpush1.msra.mxu0 0.0
    %1365 = vmatprep.subr.mxu0 0.0
    %1366 = vmatpush1.msra.mxu0 0.0
    %1367 = vmatprep.subr.mxu0 0.0
    %1368 = vmatpush1.msra.mxu0 0.0
    %1369 = vmatprep.mubr.f32.mxu0 0.0
    %1370 = vmatmul.mubr.f32.gmra.mrb[0].mxu0 %v1303
    %v1371 = vpop.f32.mrb[0].mxu0
    %v1372 = vadd.f32 0.0, %v1371
    %v1373 = vpop.f32.mrb[0].mxu0
    %1374 = vdwg.mxu0
    %v1376 = vrot.slane %v1372, 1
    %v1378 = vadd.f32 %v520, %v1376
    %v1379 = vxor.u32 %v1378, 2147483648
    %v1380 = vmul.f32 %v1379, 1.442695
    %v1381 = vpow.pop %v1380
    %v1382 = vadd.f32 %v1381, 1.0
    %v1383 = vrcp.pop %v1382
    %v1384 = vmul.f32 1.0, %v1383
    %v1385 = vtanh.pop %v1378
    %v1387 = vrot.slane %v1287, 7
    %v1389 = vmul.f32 %v1384, %v1387
    %1391 = vrot.lane.b32.xlu0 %v1385, 64
    %v1392 = vpop.permute.xlu0 %1391
    %v1394 = vmul.f32 %v1384, %v1392
    %1396 = vrot.lane.b32.xlu0 %v1394, 32
    %v1397 = vpop.permute.xlu0 %1396
    %v1399 = vadd.f32 %v1389, %v1397
    %v1400 = vtanh.pop %v1399
    %1402 = vrot.lane.b32.xlu0 %v1400, 64
    %v1403 = vpop.permute.xlu0 %1402
    %v1405 = vmul.f32 %v1384, %v1403
    %1407 = vrot.lane.b32.xlu0 %v1405, 32
    %v1408 = vpop.permute.xlu0 %1407
    %vm1410 = vcmask 261127
    %1411 = vst.msk [vmem:[#allocation3] sm:$0x80] %vm1410, %v1408
    %v1412 = vld [vmem:[#allocation3] sm:$0xff]
    %v1413 = vld [vmem:[%s5] sm:$0xff]
    %v1414 = vld [vmem:[%s5 + $0x8] sm:$0xff]
    %v1415 = vld [vmem:[%s5 + $0x10] sm:$0xff]
    %v1416 = vld [vmem:[%s5 + $0x18] sm:$0xff]
    %v1417 = vld [vmem:[%s6] sm:$0x1]
    %v1419 = vlaneseq
    %v1420 = vshrl.u32 %v1419, 7
    %v1421 = vsub.s32 0, %v1420
    %v1422 = vrot.slane %v1417, %v1421
    %v1425 = vsel %vm449, %v1412, 0
    %1427 = vmatprep.subr.mxu0 0.0
    %1428 = vmatpush1.msra.mxu0 %v1413
    %1429 = vmatprep.subr.mxu0 0.0
    %1430 = vmatpush1.msra.mxu0 %v1414
    %1431 = vmatprep.subr.mxu0 0.0
    %1432 = vmatpush1.msra.mxu0 %v1415
    %1433 = vmatprep.subr.mxu0 0.0
    %1434 = vmatpush1.msra.mxu0 %v1416
    %1435 = vmatprep.subr.mxu0 0.0
    %1436 = vmatpush1.msra.mxu0 0.0
    %1437 = vmatprep.subr.mxu0 0.0
    %1438 = vmatpush1.msra.mxu0 0.0
    %1439 = vmatprep.subr.mxu0 0.0
    %1440 = vmatpush1.msra.mxu0 0.0
    %1441 = vmatprep.subr.mxu0 0.0
    %1442 = vmatpush1.msra.mxu0 0.0
    %1443 = vmatprep.subr.mxu0 0.0
    %1444 = vmatpush1.msra.mxu0 0.0
    %1445 = vmatprep.subr.mxu0 0.0
    %1446 = vmatpush1.msra.mxu0 0.0
    %1447 = vmatprep.subr.mxu0 0.0
    %1448 = vmatpush1.msra.mxu0 0.0
    %1449 = vmatprep.subr.mxu0 0.0
    %1450 = vmatpush1.msra.mxu0 0.0
    %1451 = vmatprep.subr.mxu0 0.0
    %1452 = vmatpush1.msra.mxu0 0.0
    %1453 = vmatprep.subr.mxu0 0.0
    %1454 = vmatpush1.msra.mxu0 0.0
    %1455 = vmatprep.subr.mxu0 0.0
    %1456 = vmatpush1.msra.mxu0 0.0
    %1457 = vmatprep.subr.mxu0 0.0
    %1458 = vmatpush1.msra.mxu0 0.0
    %1459 = vmatprep.subr.mxu0 0.0
    %1460 = vmatpush1.msra.mxu0 0.0
    %1461 = vmatprep.subr.mxu0 0.0
    %1462 = vmatpush1.msra.mxu0 0.0
    %1463 = vmatprep.subr.mxu0 0.0
    %1464 = vmatpush1.msra.mxu0 0.0
    %1465 = vmatprep.subr.mxu0 0.0
    %1466 = vmatpush1.msra.mxu0 0.0
    %1467 = vmatprep.subr.mxu0 0.0
    %1468 = vmatpush1.msra.mxu0 0.0
    %1469 = vmatprep.subr.mxu0 0.0
    %1470 = vmatpush1.msra.mxu0 0.0
    %1471 = vmatprep.subr.mxu0 0.0
    %1472 = vmatpush1.msra.mxu0 0.0
    %1473 = vmatprep.subr.mxu0 0.0
    %1474 = vmatpush1.msra.mxu0 0.0
    %1475 = vmatprep.subr.mxu0 0.0
    %1476 = vmatpush1.msra.mxu0 0.0
    %1477 = vmatprep.subr.mxu0 0.0
    %1478 = vmatpush1.msra.mxu0 0.0
    %1479 = vmatprep.subr.mxu0 0.0
    %1480 = vmatpush1.msra.mxu0 0.0
    %1481 = vmatprep.subr.mxu0 0.0
    %1482 = vmatpush1.msra.mxu0 0.0
    %1483 = vmatprep.subr.mxu0 0.0
    %1484 = vmatpush1.msra.mxu0 0.0
    %1485 = vmatprep.subr.mxu0 0.0
    %1486 = vmatpush1.msra.mxu0 0.0
    %1487 = vmatprep.subr.mxu0 0.0
    %1488 = vmatpush1.msra.mxu0 0.0
    %1489 = vmatprep.subr.mxu0 0.0
    %1490 = vmatpush1.msra.mxu0 0.0
    %1491 = vmatprep.mubr.f32.mxu0 0.0
    %1492 = vmatmul.mubr.f32.gmra.mrb[0].mxu0 %v1425
    %v1493 = vpop.f32.mrb[0].mxu0
    %v1494 = vadd.f32 %v1422, %v1493
    %v1495 = vpop.f32.mrb[0].mxu0
    %1496 = vdwg.mxu0
    %1497 = vmax.xlane.f32.xlu0 %v1494
    %v1498 = vpop.xlane.xlu0 %1497
    %v1499 = vsub.f32 %v1494, %v1498
    %v1500 = vmul.f32 %v1499, 1.442695
    %v1501 = vpow.pop %v1500
    %1502 = vadd.xlane.f32.xlu0 %v1501
    %v1503 = vpop.xlane.xlu0 %1502
    %v1504 = vlog2.pop %v1503
    %v1505 = vmul.f32 %v1504, 0.6931472
    %v1506 = vadd.f32 %v1498, %v1505
    %v1507 = vsub.f32 %v1494, %v1506
    %1508 = vst [vmem:[#allocation8] sm:$0xff] %v1507
    // Predicated region
    $region270: #{tpu_custom_call.1} parent=1 // pred_check
      _
    $region271: #{tpu_custom_call.1} parent=1 // pred_check_branch
      %1510 = sbr.rel (0) target = $region273
    $region272: #{tpu_custom_call.1} parent=1 // pred_region
      %s1512 = ssub.s32 128, 128
      %1513 = vsyncadd [#allocation6], %s1512
      %s1515 = sshll.u32 [#allocation8], 4
      %s1516 = int_to_ptr.vmem [resolvable:$true] %s1515
      %1518 = dma.vmem_to_hbm [thread:$0]  %s1516, 128, %s7, [#allocation6]
    $region273: #{tpu_custom_call.1} parent=1 // pred_fallthru
      _
    // Predicated region
    $region274: #{tpu_custom_call.1} parent=1 // pred_check
      _
    $region275: #{tpu_custom_call.1} parent=1 // pred_check_branch
      %1520 = sbr.rel (0) target = $region277
    $region276: #{tpu_custom_call.1} parent=1 // pred_region
      %1521 = dma.done [#allocation6], 128
    $region277: #{tpu_custom_call.1} parent=1 // pred_fallthru
      _
    %1522 = vsyncpa [#allocation6], 1
    %1523 = vsyncpa [#allocation7], 1
  %1524 = vsyncmov [#allocation4]
  %s1525 = vpop.sfrf %1524
  %p1526 = scmp.eq.s32.totalorder %s1525, 0
  %p1527 = pneg %p1526
  %1529 = shalt.err (%p1527)
  %s1530 = scalar_lea.sflag [#allocation4], 1
  %1531 = vsyncmov %s1530
  %s1532 = vpop.sfrf %1531
  %p1533 = scmp.eq.s32.totalorder %s1532, 0
  %p1534 = pneg %p1533
  %1536 = shalt.err (%p1534)
  %s1537 = scalar_lea.sflag [#allocation4], 2
  %1538 = vsyncmov %s1537
  %s1539 = vpop.sfrf %1538
  %p1540 = scmp.eq.s32.totalorder %s1539, 0
  %p1541 = pneg %p1540
  %1543 = shalt.err (%p1541)
  %s1544 = scalar_lea.sflag [#allocation4], 3
  %1545 = vsyncmov %s1544
  %s1546 = vpop.sfrf %1545
  %p1547 = scmp.eq.s32.totalorder %s1546, 0
  %p1548 = pneg %p1547
  %1550 = shalt.err (%p1548)
  %s1551 = scalar_lea.sflag [#allocation4], 4
  %1552 = vsyncmov %s1551
  %s1553 = vpop.sfrf %1552
  %p1554 = scmp.eq.s32.totalorder %s1553, 0
  %p1555 = pneg %p1554
  %1557 = shalt.err (%p1555)
  %s1558 = scalar_lea.sflag [#allocation4], 5
  %1559 = vsyncmov %s1558
  %s1560 = vpop.sfrf %1559
  %p1561 = scmp.eq.s32.totalorder %s1560, 0
  %p1562 = pneg %p1561
  %1564 = shalt.err (%p1562)
  %s1565 = scalar_lea.sflag [#allocation4], 6
  %1566 = vsyncmov %s1565
  %s1567 = vpop.sfrf %1566
  %p1568 = scmp.eq.s32.totalorder %s1567, 0
  %p1569 = pneg %p1568
  %1571 = shalt.err (%p1569)
  %s1572 = scalar_lea.sflag [#allocation4], 7
  %1573 = vsyncmov %s1572
  %s1574 = vpop.sfrf %1573
  %p1575 = scmp.eq.s32.totalorder %s1574, 0
  %p1576 = pneg %p1575
  %1578 = shalt.err (%p1576)

</llo_original>
